<compile_context>
chip_gen: v7x
topology: tpu7x:2x2x1
jax: 0.10.0
libtpu: 0.0.40
codegen_flags: <defaults>
</compile_context>

<pallas_src>
import functools

import jax
import jax.numpy as jnp
from jax.experimental import pallas as pl
from jax.experimental.pallas import tpu as pltpu


def _decoder_kernel(n_fc_layers, n_layers, H, S, B, *refs):
    """Full Decoder forward: latent MLP -> stacked LSTM -> output projection."""
    idx = 0
    latent_ref = refs[idx]; idx += 1                     # (B, Ld)
    cond_ref = refs[idx]; idx += 1                       # (S*B, C) time-major flat
    w_rl = refs[idx]; b_rl = refs[idx + 1]; idx += 2     # (Ld, H), (1, H)
    fc_w, fc_b = [], []
    for _ in range(n_fc_layers):
        fc_w.append(refs[idx]); fc_b.append(refs[idx + 1]); idx += 2
    w_x0 = refs[idx]; w_c0 = refs[idx + 1]                # (H, 4H), (C, 4H)
    w_hh0 = refs[idx + 2]; b0 = refs[idx + 3]; idx += 4   # (H, 4H), (1, 4H)
    w_l, b_l = [], []
    for _ in range(n_layers - 1):
        w_l.append(refs[idx]); b_l.append(refs[idx + 1]); idx += 2  # (2H,4H),(1,4H)
    w_out = refs[idx]; b_out = refs[idx + 1]; idx += 2    # (H, Dout), (1, Dout)
    out_ref = refs[idx]; idx += 1                         # (S*B, Dout)
    gproj_ref = refs[idx]; idx += 1                       # (S*B, 4H) VMEM scratch

    H3 = 3 * H

    # ---- reverse_latent (no activation) + FC stack (ReLU) ----
    hidden = jnp.dot(latent_ref[...], w_rl[...],
                     preferred_element_type=jnp.float32) + b_rl[...]
    for i in range(n_fc_layers):
        hidden = jnp.maximum(
            jnp.dot(hidden, fc_w[i][...],
                    preferred_element_type=jnp.float32) + fc_b[i][...],
            0.0)

    # ---- layer-0 gate pre-activations that are constant w.r.t. the recurrence
    # gproj[t*B:(t+1)*B] = cond_t @ w_c0 + hidden @ w_x0 + b0   (all t at once)
    xh0 = jnp.dot(hidden, w_x0[...], preferred_element_type=jnp.float32) + b0[...]
    gproj_ref[...] = (jnp.dot(cond_ref[...], w_c0[...],
                              preferred_element_type=jnp.float32)
                      + jnp.tile(xh0, (S, 1)))

    whh0 = w_hh0[...]
    wl = [w_l[i][...] for i in range(n_layers - 1)]
    # Hoisted bias broadcasts (broadcast_in_dim is not CSE'd inside loops).
    blc = [jnp.broadcast_to(b_l[i][...], (B, 4 * H)) for i in range(n_layers - 1)]

    def lstm_cell(gates, c_prev):
        # Gate columns pre-permuted in the wrapper to [i | f | o | g]:
        # one sigmoid over 3H lanes + one tanh over H lanes (2 EUP pushes).
        sig = jax.nn.sigmoid(gates[:, :H3])
        i_g = sig[:, 0 * H:1 * H]
        f_g = sig[:, 1 * H:2 * H]
        o_g = sig[:, 2 * H:3 * H]
        g_g = jnp.tanh(gates[:, H3:])
        c_new = f_g * c_prev + i_g * g_g
        return o_g * jnp.tanh(c_new), c_new

    hs = [jnp.zeros((B, H), jnp.float32) for _ in range(n_layers)]
    cs = [jnp.zeros((B, H), jnp.float32) for _ in range(n_layers)]
    h_top = []

    # ---- stacked LSTM, fully unrolled over the (static, small) time axis ----
    for t in range(S):
        row = t * B
        # Layer 0: everything except h_{t-1} @ w_hh0 is precomputed in gproj,
        # so the per-step dependent chain is matmul -> add -> nonlinearities.
        gates0 = gproj_ref[pl.ds(row, B), :] + jnp.dot(
            hs[0], whh0, preferred_element_type=jnp.float32)
        hs[0], cs[0] = lstm_cell(gates0, cs[0])
        x_in = hs[0]

        # Layers 1..n-1: fused input+recurrent matmul (one MXU push per step).
        for l in range(1, n_layers):
            xin_h = jnp.concatenate([x_in, hs[l]], axis=1)          # (B, 2H)
            gates = jnp.dot(xin_h, wl[l - 1],
                            preferred_element_type=jnp.float32) + blc[l - 1]
            hs[l], cs[l] = lstm_cell(gates, cs[l])
            x_in = hs[l]

        h_top.append(x_in)

    # ---- output projection: one bulk matmul + one bulk store ----
    h_all = jnp.concatenate(h_top, axis=0)                          # (S*B, H)
    out_ref[...] = (jnp.dot(h_all, w_out[...],
                            preferred_element_type=jnp.float32) + b_out[...])


@functools.partial(jax.jit, static_argnames=("n_fc_layers", "n_layers"))
def decoder_forward(params, latent, condition, *, n_fc_layers, n_layers):
    """Pallas wrapper. latent: (B, Ld); condition: (B, S, C). Returns (B, S, Dout)."""
    B, _ = latent.shape
    _, S, C = condition.shape
    H = params["w_rl"].shape[1]
    Dout = params["w_out"].shape[1]

    # Pad batch (sublane dim) to a multiple of 8: full (8,128) vregs, no masked
    # partial loads/stores. Padded rows are computed and then discarded.
    B_pad = ((B + 7) // 8) * 8
    latent_p = jnp.pad(latent, ((0, B_pad - B), (0, 0)))
    cond_p = jnp.pad(condition, ((0, B_pad - B), (0, 0), (0, 0)))
    # time-major, flattened to 2D so every per-step read is an aligned slice
    cond_flat = jnp.transpose(cond_p, (1, 0, 2)).reshape(S * B_pad, C)

    def perm_gates(w):
        # PyTorch gate order [i | f | g | o] -> [i | f | o | g] along last axis
        return jnp.concatenate(
            [w[..., :2 * H], w[..., 3 * H:4 * H], w[..., 2 * H:3 * H]], axis=-1)

    # layer-0 weights: split input rows [hidden | condition], permute gate cols
    w_ih0 = perm_gates(params["w_ih0"])
    w_x0, w_c0 = w_ih0[:H], w_ih0[H:]
    w_hh0 = perm_gates(params["w_hh0"])
    b0 = perm_gates(params["b_l0"])

    inputs = [latent_p, cond_flat, params["w_rl"], params["b_rl"]]
    for i in range(n_fc_layers):
        inputs += [params[f"w_fc{i}"], params[f"b_fc{i}"]]
    inputs += [w_x0, w_c0, w_hh0, b0]
    for l in range(1, n_layers):
        # fuse input + recurrent weights into one (2H, 4H) matrix per layer
        w_cat = jnp.concatenate([params[f"w_ih{l}"], params[f"w_hh{l}"]], axis=0)
        inputs += [perm_gates(w_cat), perm_gates(params[f"b_l{l}"])]
    inputs += [params["w_out"], params["b_out"]]

    kernel = functools.partial(_decoder_kernel, n_fc_layers, n_layers, H, S, B_pad)
    vmem = pl.BlockSpec(memory_space=pltpu.MemorySpace.VMEM)

    # TODO(synk): for large B on v7x, add a batch grid with
    #   dimension_semantics=("parallel",) to engage the second TensorCore; only
    #   stream time blocks if S*B_pad*4H*4 bytes approaches the scoped VMEM limit.
    out_flat = pl.pallas_call(
        kernel,
        out_shape=jax.ShapeDtypeStruct((S * B_pad, Dout), jnp.float32),
        in_specs=[vmem] * len(inputs),
        out_specs=vmem,
        scratch_shapes=[pltpu.VMEM((S * B_pad, 4 * H), jnp.float32)],
    )(*inputs)

    # reshape is a bitcast; transpose + slice fuse into one op under jit.
    out = out_flat.reshape(S, B_pad, Dout)
    return jnp.transpose(out, (1, 0, 2))[:B]            # back to (B, S, Dout)


def decoder_reference(params, latent, condition, *, n_fc_layers, n_layers):
    """Pure-JAX reference (mirrors the PyTorch forward) for validation."""
    hidden = latent @ params["w_rl"] + params["b_rl"]
    for i in range(n_fc_layers):
        hidden = jax.nn.relu(hidden @ params[f"w_fc{i}"] + params[f"b_fc{i}"])
    B, S, _ = condition.shape
    H = hidden.shape[1]
    inp = jnp.concatenate(
        [jnp.repeat(hidden[:, None, :], S, axis=1), condition], axis=-1)
    for l in range(n_layers):
        w_ih, w_hh, b = params[f"w_ih{l}"], params[f"w_hh{l}"], params[f"b_l{l}"]
        h = jnp.zeros((B, H), jnp.float32)
        c = jnp.zeros((B, H), jnp.float32)
        outs = []
        for t in range(S):
            gates = inp[:, t, :] @ w_ih + h @ w_hh + b
            i_g = jax.nn.sigmoid(gates[:, :H])
            f_g = jax.nn.sigmoid(gates[:, H:2 * H])
            g_g = jnp.tanh(gates[:, 2 * H:3 * H])
            o_g = jax.nn.sigmoid(gates[:, 3 * H:])
            c = f_g * c + i_g * g_g
            h = o_g * jnp.tanh(c)
            outs.append(h)
        inp = jnp.stack(outs, axis=1)
    return inp @ params["w_out"] + params["b_out"]


def init_params(key, latent_dim, hidden_dim, condition_dim, output_dim,
                n_fc_layers, n_layers):
    """Deterministic synthetic parameters (shapes match the nn.Module)."""
    params = {}
    keys = iter(jax.random.split(key, 64))

    def rnd(shape, fan_in):
        s = 1.0 / jnp.sqrt(jnp.float32(fan_in))
        return jax.random.uniform(next(keys), shape, jnp.float32, -s, s)

    H, C = hidden_dim, condition_dim
    params["w_rl"] = rnd((latent_dim, H), latent_dim)
    params["b_rl"] = rnd((1, H), latent_dim)
    for i in range(n_fc_layers):
        params[f"w_fc{i}"] = rnd((H, H), H)
        params[f"b_fc{i}"] = rnd((1, H), H)
    for l in range(n_layers):
        in_dim = H + C if l == 0 else H
        params[f"w_ih{l}"] = rnd((in_dim, 4 * H), H)
        params[f"w_hh{l}"] = rnd((H, 4 * H), H)
        params[f"b_l{l}"] = rnd((1, 4 * H), H)      # combined b_ih + b_hh
    params["w_out"] = rnd((H, output_dim), H)
    params["b_out"] = rnd((1, output_dim), H)
    return params


if __name__ == "__main__":
    B, S = 2, 8
    latent_dim, hidden_dim, condition_dim, output_dim = 8, 32, 16, 16
    n_layers, n_fc_layers = 2, 2

    key = jax.random.PRNGKey(0)
    k_params, k_lat, k_cond = jax.random.split(key, 3)

    params = init_params(k_params, latent_dim, hidden_dim, condition_dim,
                         output_dim, n_fc_layers, n_layers)
    latent = jax.random.normal(k_lat, (B, latent_dim), jnp.float32)
    condition = jax.random.normal(k_cond, (B, S, condition_dim), jnp.float32)

    out = decoder_forward(params, latent, condition,
                          n_fc_layers=n_fc_layers, n_layers=n_layers)
    out = jax.block_until_ready(out)

    ref = decoder_reference(params, latent, condition,
                            n_fc_layers=n_fc_layers, n_layers=n_layers)

    assert out.shape == (B, S, output_dim), out.shape
    max_err = float(jnp.max(jnp.abs(out - ref)))
    if max_err > 1e-3:
        raise AssertionError(f"kernel mismatch vs reference: max_err={max_err}")

    print("KERNEL_OK")
</pallas_src>

<mosaic_0001>
module attributes {stable_mosaic.version = 11 : i64} {
  func.func @_decoder_kernel(%arg0: memref<8x8xf32, #tpu.memory_space<vmem>>, %arg1: memref<64x16xf32, #tpu.memory_space<vmem>>, %arg2: memref<8x32xf32, #tpu.memory_space<vmem>>, %arg3: memref<1x32xf32, #tpu.memory_space<vmem>>, %arg4: memref<32x32xf32, #tpu.memory_space<vmem>>, %arg5: memref<1x32xf32, #tpu.memory_space<vmem>>, %arg6: memref<32x32xf32, #tpu.memory_space<vmem>>, %arg7: memref<1x32xf32, #tpu.memory_space<vmem>>, %arg8: memref<32x128xf32, #tpu.memory_space<vmem>>, %arg9: memref<16x128xf32, #tpu.memory_space<vmem>>, %arg10: memref<32x128xf32, #tpu.memory_space<vmem>>, %arg11: memref<1x128xf32, #tpu.memory_space<vmem>>, %arg12: memref<64x128xf32, #tpu.memory_space<vmem>>, %arg13: memref<1x128xf32, #tpu.memory_space<vmem>>, %arg14: memref<32x16xf32, #tpu.memory_space<vmem>>, %arg15: memref<1x16xf32, #tpu.memory_space<vmem>>, %arg16: memref<64x16xf32, #tpu.memory_space<vmem>>, %arg17: memref<64x128xf32, #tpu.memory_space<vmem>>) attributes {dimension_semantics = [], scalar_prefetch = 0 : i64, scratch_operands = 1 : i64, tpu.core_type = #tpu.core_type<tc>} {
    %c0 = arith.constant 0 : index
    %c0_0 = arith.constant 0 : index
    %0 = vector.load %arg0[%c0, %c0_0] : memref<8x8xf32, #tpu.memory_space<vmem>>, vector<8x8xf32>
    %c0_1 = arith.constant 0 : index
    %c0_2 = arith.constant 0 : index
    %1 = vector.load %arg2[%c0_1, %c0_2] : memref<8x32xf32, #tpu.memory_space<vmem>>, vector<8x32xf32>
    %cst = arith.constant dense<0.000000e+00> : vector<8x32xf32>
    %2 = tpu.matmul %0, %1, %cst {dimension_numbers = #tpu.dot_dimension_numbers<[1], [0], [0], [1], [0, 0, 1, 1], [], []>} : vector<8x8xf32>, vector<8x32xf32>, vector<8x32xf32> -> vector<8x32xf32>
    %c0_3 = arith.constant 0 : index
    %c0_4 = arith.constant 0 : index
    %3 = vector.load %arg3[%c0_3, %c0_4] : memref<1x32xf32, #tpu.memory_space<vmem>>, vector<1x32xf32>
    %4 = vector.broadcast %3 : vector<1x32xf32> to vector<8x32xf32>
    %5 = arith.addf %2, %4 : vector<8x32xf32>
    %c0_5 = arith.constant 0 : index
    %c0_6 = arith.constant 0 : index
    %6 = vector.load %arg4[%c0_5, %c0_6] : memref<32x32xf32, #tpu.memory_space<vmem>>, vector<32x32xf32>
    %cst_7 = arith.constant dense<0.000000e+00> : vector<8x32xf32>
    %7 = tpu.matmul %5, %6, %cst_7 {dimension_numbers = #tpu.dot_dimension_numbers<[1], [0], [0], [1], [0, 0, 1, 1], [], []>} : vector<8x32xf32>, vector<32x32xf32>, vector<8x32xf32> -> vector<8x32xf32>
    %c0_8 = arith.constant 0 : index
    %c0_9 = arith.constant 0 : index
    %8 = vector.load %arg5[%c0_8, %c0_9] : memref<1x32xf32, #tpu.memory_space<vmem>>, vector<1x32xf32>
    %9 = vector.broadcast %8 : vector<1x32xf32> to vector<8x32xf32>
    %10 = arith.addf %7, %9 : vector<8x32xf32>
    %cst_10 = arith.constant 0.000000e+00 : f32
    %11 = vector.broadcast %cst_10 : f32 to vector<8x32xf32>
    %12 = arith.maximumf %10, %11 : vector<8x32xf32>
    %c0_11 = arith.constant 0 : index
    %c0_12 = arith.constant 0 : index
    %13 = vector.load %arg6[%c0_11, %c0_12] : memref<32x32xf32, #tpu.memory_space<vmem>>, vector<32x32xf32>
    %cst_13 = arith.constant dense<0.000000e+00> : vector<8x32xf32>
    %14 = tpu.matmul %12, %13, %cst_13 {dimension_numbers = #tpu.dot_dimension_numbers<[1], [0], [0], [1], [0, 0, 1, 1], [], []>} : vector<8x32xf32>, vector<32x32xf32>, vector<8x32xf32> -> vector<8x32xf32>
    %c0_14 = arith.constant 0 : index
    %c0_15 = arith.constant 0 : index
    %15 = vector.load %arg7[%c0_14, %c0_15] : memref<1x32xf32, #tpu.memory_space<vmem>>, vector<1x32xf32>
    %16 = vector.broadcast %15 : vector<1x32xf32> to vector<8x32xf32>
    %17 = arith.addf %14, %16 : vector<8x32xf32>
    %cst_16 = arith.constant 0.000000e+00 : f32
    %18 = vector.broadcast %cst_16 : f32 to vector<8x32xf32>
    %19 = arith.maximumf %17, %18 : vector<8x32xf32>
    %c0_17 = arith.constant 0 : index
    %c0_18 = arith.constant 0 : index
    %20 = vector.load %arg8[%c0_17, %c0_18] : memref<32x128xf32, #tpu.memory_space<vmem>>, vector<32x128xf32>
    %cst_19 = arith.constant dense<0.000000e+00> : vector<8x128xf32>
    %21 = tpu.matmul %19, %20, %cst_19 {dimension_numbers = #tpu.dot_dimension_numbers<[1], [0], [0], [1], [0, 0, 1, 1], [], []>} : vector<8x32xf32>, vector<32x128xf32>, vector<8x128xf32> -> vector<8x128xf32>
    %c0_20 = arith.constant 0 : index
    %c0_21 = arith.constant 0 : index
    %22 = vector.load %arg11[%c0_20, %c0_21] : memref<1x128xf32, #tpu.memory_space<vmem>>, vector<1x128xf32>
    %23 = vector.broadcast %22 : vector<1x128xf32> to vector<8x128xf32>
    %24 = arith.addf %21, %23 : vector<8x128xf32>
    %c0_22 = arith.constant 0 : index
    %c0_23 = arith.constant 0 : index
    %25 = vector.load %arg1[%c0_22, %c0_23] : memref<64x16xf32, #tpu.memory_space<vmem>>, vector<64x16xf32>
    %c0_24 = arith.constant 0 : index
    %c0_25 = arith.constant 0 : index
    %26 = vector.load %arg9[%c0_24, %c0_25] : memref<16x128xf32, #tpu.memory_space<vmem>>, vector<16x128xf32>
    %cst_26 = arith.constant dense<0.000000e+00> : vector<64x128xf32>
    %27 = tpu.matmul %25, %26, %cst_26 {dimension_numbers = #tpu.dot_dimension_numbers<[1], [0], [0], [1], [0, 0, 1, 1], [], []>} : vector<64x16xf32>, vector<16x128xf32>, vector<64x128xf32> -> vector<64x128xf32>
    %28 = tpu.concatenate %24, %24, %24, %24, %24, %24, %24, %24 in 0 : vector<8x128xf32>, vector<8x128xf32>, vector<8x128xf32>, vector<8x128xf32>, vector<8x128xf32>, vector<8x128xf32>, vector<8x128xf32>, vector<8x128xf32> -> vector<64x128xf32>
    %29 = arith.addf %27, %28 : vector<64x128xf32>
    %c0_27 = arith.constant 0 : index
    %c0_28 = arith.constant 0 : index
    %30 = vector.load %arg17[%c0_27, %c0_28] : memref<64x128xf32, #tpu.memory_space<vmem>>, vector<64x128xf32>
    tpu.vector_store %arg17[%c0_27, %c0_28], %29 {strides = array<i32>} : memref<64x128xf32, #tpu.memory_space<vmem>>, vector<64x128xf32>,
    %c0_29 = arith.constant 0 : index
    %c0_30 = arith.constant 0 : index
    %31 = vector.load %arg10[%c0_29, %c0_30] : memref<32x128xf32, #tpu.memory_space<vmem>>, vector<32x128xf32>
    %c0_31 = arith.constant 0 : index
    %c0_32 = arith.constant 0 : index
    %32 = vector.load %arg12[%c0_31, %c0_32] : memref<64x128xf32, #tpu.memory_space<vmem>>, vector<64x128xf32>
    %c0_33 = arith.constant 0 : index
    %c0_34 = arith.constant 0 : index
    %33 = vector.load %arg13[%c0_33, %c0_34] : memref<1x128xf32, #tpu.memory_space<vmem>>, vector<1x128xf32>
    %34 = vector.shape_cast %33 : vector<1x128xf32> to vector<1x128xf32>
    %35 = vector.broadcast %34 : vector<1x128xf32> to vector<8x128xf32>
    %cst_35 = arith.constant 0.000000e+00 : f32
    %36 = vector.broadcast %cst_35 : f32 to vector<8x32xf32>
    %cst_36 = arith.constant 0.000000e+00 : f32
    %37 = vector.broadcast %cst_36 : f32 to vector<8x32xf32>
    %cst_37 = arith.constant 0.000000e+00 : f32
    %38 = vector.broadcast %cst_37 : f32 to vector<8x32xf32>
    %cst_38 = arith.constant 0.000000e+00 : f32
    %39 = vector.broadcast %cst_38 : f32 to vector<8x32xf32>
    %c0_39 = arith.constant 0 : index
    %c0_40 = arith.constant 0 : index
    %40 = vector.load %arg17[%c0_39, %c0_40] : memref<64x128xf32, #tpu.memory_space<vmem>>, vector<8x128xf32>
    %cst_41 = arith.constant dense<0.000000e+00> : vector<8x128xf32>
    %41 = tpu.matmul %36, %31, %cst_41 {dimension_numbers = #tpu.dot_dimension_numbers<[1], [0], [0], [1], [0, 0, 1, 1], [], []>} : vector<8x32xf32>, vector<32x128xf32>, vector<8x128xf32> -> vector<8x128xf32>
    %42 = arith.addf %40, %41 : vector<8x128xf32>
    %43 = vector.extract_strided_slice %42 {offsets = [0, 0], sizes = [8, 96], strides = [1, 1]} : vector<8x128xf32> to vector<8x96xf32>
    %44 = arith.negf %43 : vector<8x96xf32>
    %45 = math.exp %44 : vector<8x96xf32>
    %cst_42 = arith.constant 1.000000e+00 : f32
    %46 = vector.broadcast %cst_42 : f32 to vector<8x96xf32>
    %47 = arith.addf %46, %45 : vector<8x96xf32>
    %48 = arith.divf %46, %47 : vector<8x96xf32>
    %49 = vector.extract_strided_slice %48 {offsets = [0, 0], sizes = [8, 32], strides = [1, 1]} : vector<8x96xf32> to vector<8x32xf32>
    %50 = vector.extract_strided_slice %48 {offsets = [0, 32], sizes = [8, 32], strides = [1, 1]} : vector<8x96xf32> to vector<8x32xf32>
    %51 = vector.extract_strided_slice %48 {offsets = [0, 64], sizes = [8, 32], strides = [1, 1]} : vector<8x96xf32> to vector<8x32xf32>
    %52 = vector.extract_strided_slice %42 {offsets = [0, 96], sizes = [8, 32], strides = [1, 1]} : vector<8x128xf32> to vector<8x32xf32>
    %53 = math.tanh %52 : vector<8x32xf32>
    %54 = arith.mulf %50, %38 : vector<8x32xf32>
    %55 = arith.mulf %49, %53 : vector<8x32xf32>
    %56 = arith.addf %54, %55 : vector<8x32xf32>
    %57 = math.tanh %56 : vector<8x32xf32>
    %58 = arith.mulf %51, %57 : vector<8x32xf32>
    %59 = tpu.concatenate %58, %37 in 1 : vector<8x32xf32>, vector<8x32xf32> -> vector<8x64xf32>
    %cst_43 = arith.constant dense<0.000000e+00> : vector<8x128xf32>
    %60 = tpu.matmul %59, %32, %cst_43 {dimension_numbers = #tpu.dot_dimension_numbers<[1], [0], [0], [1], [0, 0, 1, 1], [], []>} : vector<8x64xf32>, vector<64x128xf32>, vector<8x128xf32> -> vector<8x128xf32>
    %61 = arith.addf %60, %35 : vector<8x128xf32>
    %62 = vector.extract_strided_slice %61 {offsets = [0, 0], sizes = [8, 96], strides = [1, 1]} : vector<8x128xf32> to vector<8x96xf32>
    %63 = arith.negf %62 : vector<8x96xf32>
    %64 = math.exp %63 : vector<8x96xf32>
    %cst_44 = arith.constant 1.000000e+00 : f32
    %65 = vector.broadcast %cst_44 : f32 to vector<8x96xf32>
    %66 = arith.addf %65, %64 : vector<8x96xf32>
    %67 = arith.divf %65, %66 : vector<8x96xf32>
    %68 = vector.extract_strided_slice %67 {offsets = [0, 0], sizes = [8, 32], strides = [1, 1]} : vector<8x96xf32> to vector<8x32xf32>
    %69 = vector.extract_strided_slice %67 {offsets = [0, 32], sizes = [8, 32], strides = [1, 1]} : vector<8x96xf32> to vector<8x32xf32>
    %70 = vector.extract_strided_slice %67 {offsets = [0, 64], sizes = [8, 32], strides = [1, 1]} : vector<8x96xf32> to vector<8x32xf32>
    %71 = vector.extract_strided_slice %61 {offsets = [0, 96], sizes = [8, 32], strides = [1, 1]} : vector<8x128xf32> to vector<8x32xf32>
    %72 = math.tanh %71 : vector<8x32xf32>
    %73 = arith.mulf %69, %39 : vector<8x32xf32>
    %74 = arith.mulf %68, %72 : vector<8x32xf32>
    %75 = arith.addf %73, %74 : vector<8x32xf32>
    %76 = math.tanh %75 : vector<8x32xf32>
    %77 = arith.mulf %70, %76 : vector<8x32xf32>
    %c8 = arith.constant 8 : index
    %c0_45 = arith.constant 0 : index
    %78 = vector.load %arg17[%c8, %c0_45] : memref<64x128xf32, #tpu.memory_space<vmem>>, vector<8x128xf32>
    %cst_46 = arith.constant dense<0.000000e+00> : vector<8x128xf32>
    %79 = tpu.matmul %58, %31, %cst_46 {dimension_numbers = #tpu.dot_dimension_numbers<[1], [0], [0], [1], [0, 0, 1, 1], [], []>} : vector<8x32xf32>, vector<32x128xf32>, vector<8x128xf32> -> vector<8x128xf32>
    %80 = arith.addf %78, %79 : vector<8x128xf32>
    %81 = vector.extract_strided_slice %80 {offsets = [0, 0], sizes = [8, 96], strides = [1, 1]} : vector<8x128xf32> to vector<8x96xf32>
    %82 = arith.negf %81 : vector<8x96xf32>
    %83 = math.exp %82 : vector<8x96xf32>
    %cst_47 = arith.constant 1.000000e+00 : f32
    %84 = vector.broadcast %cst_47 : f32 to vector<8x96xf32>
    %85 = arith.addf %84, %83 : vector<8x96xf32>
    %86 = arith.divf %84, %85 : vector<8x96xf32>
    %87 = vector.extract_strided_slice %86 {offsets = [0, 0], sizes = [8, 32], strides = [1, 1]} : vector<8x96xf32> to vector<8x32xf32>
    %88 = vector.extract_strided_slice %86 {offsets = [0, 32], sizes = [8, 32], strides = [1, 1]} : vector<8x96xf32> to vector<8x32xf32>
    %89 = vector.extract_strided_slice %86 {offsets = [0, 64], sizes = [8, 32], strides = [1, 1]} : vector<8x96xf32> to vector<8x32xf32>
    %90 = vector.extract_strided_slice %80 {offsets = [0, 96], sizes = [8, 32], strides = [1, 1]} : vector<8x128xf32> to vector<8x32xf32>
    %91 = math.tanh %90 : vector<8x32xf32>
    %92 = arith.mulf %88, %56 : vector<8x32xf32>
    %93 = arith.mulf %87, %91 : vector<8x32xf32>
    %94 = arith.addf %92, %93 : vector<8x32xf32>
    %95 = math.tanh %94 : vector<8x32xf32>
    %96 = arith.mulf %89, %95 : vector<8x32xf32>
    %97 = tpu.concatenate %96, %77 in 1 : vector<8x32xf32>, vector<8x32xf32> -> vector<8x64xf32>
    %cst_48 = arith.constant dense<0.000000e+00> : vector<8x128xf32>
    %98 = tpu.matmul %97, %32, %cst_48 {dimension_numbers = #tpu.dot_dimension_numbers<[1], [0], [0], [1], [0, 0, 1, 1], [], []>} : vector<8x64xf32>, vector<64x128xf32>, vector<8x128xf32> -> vector<8x128xf32>
    %99 = arith.addf %98, %35 : vector<8x128xf32>
    %100 = vector.extract_strided_slice %99 {offsets = [0, 0], sizes = [8, 96], strides = [1, 1]} : vector<8x128xf32> to vector<8x96xf32>
    %101 = arith.negf %100 : vector<8x96xf32>
    %102 = math.exp %101 : vector<8x96xf32>
    %cst_49 = arith.constant 1.000000e+00 : f32
    %103 = vector.broadcast %cst_49 : f32 to vector<8x96xf32>
    %104 = arith.addf %103, %102 : vector<8x96xf32>
    %105 = arith.divf %103, %104 : vector<8x96xf32>
    %106 = vector.extract_strided_slice %105 {offsets = [0, 0], sizes = [8, 32], strides = [1, 1]} : vector<8x96xf32> to vector<8x32xf32>
    %107 = vector.extract_strided_slice %105 {offsets = [0, 32], sizes = [8, 32], strides = [1, 1]} : vector<8x96xf32> to vector<8x32xf32>
    %108 = vector.extract_strided_slice %105 {offsets = [0, 64], sizes = [8, 32], strides = [1, 1]} : vector<8x96xf32> to vector<8x32xf32>
    %109 = vector.extract_strided_slice %99 {offsets = [0, 96], sizes = [8, 32], strides = [1, 1]} : vector<8x128xf32> to vector<8x32xf32>
    %110 = math.tanh %109 : vector<8x32xf32>
    %111 = arith.mulf %107, %75 : vector<8x32xf32>
    %112 = arith.mulf %106, %110 : vector<8x32xf32>
    %113 = arith.addf %111, %112 : vector<8x32xf32>
    %114 = math.tanh %113 : vector<8x32xf32>
    %115 = arith.mulf %108, %114 : vector<8x32xf32>
    %c16 = arith.constant 16 : index
    %c0_50 = arith.constant 0 : index
    %116 = vector.load %arg17[%c16, %c0_50] : memref<64x128xf32, #tpu.memory_space<vmem>>, vector<8x128xf32>
    %cst_51 = arith.constant dense<0.000000e+00> : vector<8x128xf32>
    %117 = tpu.matmul %96, %31, %cst_51 {dimension_numbers = #tpu.dot_dimension_numbers<[1], [0], [0], [1], [0, 0, 1, 1], [], []>} : vector<8x32xf32>, vector<32x128xf32>, vector<8x128xf32> -> vector<8x128xf32>
    %118 = arith.addf %116, %117 : vector<8x128xf32>
    %119 = vector.extract_strided_slice %118 {offsets = [0, 0], sizes = [8, 96], strides = [1, 1]} : vector<8x128xf32> to vector<8x96xf32>
    %120 = arith.negf %119 : vector<8x96xf32>
    %121 = math.exp %120 : vector<8x96xf32>
    %cst_52 = arith.constant 1.000000e+00 : f32
    %122 = vector.broadcast %cst_52 : f32 to vector<8x96xf32>
    %123 = arith.addf %122, %121 : vector<8x96xf32>
    %124 = arith.divf %122, %123 : vector<8x96xf32>
    %125 = vector.extract_strided_slice %124 {offsets = [0, 0], sizes = [8, 32], strides = [1, 1]} : vector<8x96xf32> to vector<8x32xf32>
    %126 = vector.extract_strided_slice %124 {offsets = [0, 32], sizes = [8, 32], strides = [1, 1]} : vector<8x96xf32> to vector<8x32xf32>
    %127 = vector.extract_strided_slice %124 {offsets = [0, 64], sizes = [8, 32], strides = [1, 1]} : vector<8x96xf32> to vector<8x32xf32>
    %128 = vector.extract_strided_slice %118 {offsets = [0, 96], sizes = [8, 32], strides = [1, 1]} : vector<8x128xf32> to vector<8x32xf32>
    %129 = math.tanh %128 : vector<8x32xf32>
    %130 = arith.mulf %126, %94 : vector<8x32xf32>
    %131 = arith.mulf %125, %129 : vector<8x32xf32>
    %132 = arith.addf %130, %131 : vector<8x32xf32>
    %133 = math.tanh %132 : vector<8x32xf32>
    %134 = arith.mulf %127, %133 : vector<8x32xf32>
    %135 = tpu.concatenate %134, %115 in 1 : vector<8x32xf32>, vector<8x32xf32> -> vector<8x64xf32>
    %cst_53 = arith.constant dense<0.000000e+00> : vector<8x128xf32>
    %136 = tpu.matmul %135, %32, %cst_53 {dimension_numbers = #tpu.dot_dimension_numbers<[1], [0], [0], [1], [0, 0, 1, 1], [], []>} : vector<8x64xf32>, vector<64x128xf32>, vector<8x128xf32> -> vector<8x128xf32>
    %137 = arith.addf %136, %35 : vector<8x128xf32>
    %138 = vector.extract_strided_slice %137 {offsets = [0, 0], sizes = [8, 96], strides = [1, 1]} : vector<8x128xf32> to vector<8x96xf32>
    %139 = arith.negf %138 : vector<8x96xf32>
    %140 = math.exp %139 : vector<8x96xf32>
    %cst_54 = arith.constant 1.000000e+00 : f32
    %141 = vector.broadcast %cst_54 : f32 to vector<8x96xf32>
    %142 = arith.addf %141, %140 : vector<8x96xf32>
    %143 = arith.divf %141, %142 : vector<8x96xf32>
    %144 = vector.extract_strided_slice %143 {offsets = [0, 0], sizes = [8, 32], strides = [1, 1]} : vector<8x96xf32> to vector<8x32xf32>
    %145 = vector.extract_strided_slice %143 {offsets = [0, 32], sizes = [8, 32], strides = [1, 1]} : vector<8x96xf32> to vector<8x32xf32>
    %146 = vector.extract_strided_slice %143 {offsets = [0, 64], sizes = [8, 32], strides = [1, 1]} : vector<8x96xf32> to vector<8x32xf32>
    %147 = vector.extract_strided_slice %137 {offsets = [0, 96], sizes = [8, 32], strides = [1, 1]} : vector<8x128xf32> to vector<8x32xf32>
    %148 = math.tanh %147 : vector<8x32xf32>
    %149 = arith.mulf %145, %113 : vector<8x32xf32>
    %150 = arith.mulf %144, %148 : vector<8x32xf32>
    %151 = arith.addf %149, %150 : vector<8x32xf32>
    %152 = math.tanh %151 : vector<8x32xf32>
    %153 = arith.mulf %146, %152 : vector<8x32xf32>
    %c24 = arith.constant 24 : index
    %c0_55 = arith.constant 0 : index
    %154 = vector.load %arg17[%c24, %c0_55] : memref<64x128xf32, #tpu.memory_space<vmem>>, vector<8x128xf32>
    %cst_56 = arith.constant dense<0.000000e+00> : vector<8x128xf32>
    %155 = tpu.matmul %134, %31, %cst_56 {dimension_numbers = #tpu.dot_dimension_numbers<[1], [0], [0], [1], [0, 0, 1, 1], [], []>} : vector<8x32xf32>, vector<32x128xf32>, vector<8x128xf32> -> vector<8x128xf32>
    %156 = arith.addf %154, %155 : vector<8x128xf32>
    %157 = vector.extract_strided_slice %156 {offsets = [0, 0], sizes = [8, 96], strides = [1, 1]} : vector<8x128xf32> to vector<8x96xf32>
    %158 = arith.negf %157 : vector<8x96xf32>
    %159 = math.exp %158 : vector<8x96xf32>
    %cst_57 = arith.constant 1.000000e+00 : f32
    %160 = vector.broadcast %cst_57 : f32 to vector<8x96xf32>
    %161 = arith.addf %160, %159 : vector<8x96xf32>
    %162 = arith.divf %160, %161 : vector<8x96xf32>
    %163 = vector.extract_strided_slice %162 {offsets = [0, 0], sizes = [8, 32], strides = [1, 1]} : vector<8x96xf32> to vector<8x32xf32>
    %164 = vector.extract_strided_slice %162 {offsets = [0, 32], sizes = [8, 32], strides = [1, 1]} : vector<8x96xf32> to vector<8x32xf32>
    %165 = vector.extract_strided_slice %162 {offsets = [0, 64], sizes = [8, 32], strides = [1, 1]} : vector<8x96xf32> to vector<8x32xf32>
    %166 = vector.extract_strided_slice %156 {offsets = [0, 96], sizes = [8, 32], strides = [1, 1]} : vector<8x128xf32> to vector<8x32xf32>
    %167 = math.tanh %166 : vector<8x32xf32>
    %168 = arith.mulf %164, %132 : vector<8x32xf32>
    %169 = arith.mulf %163, %167 : vector<8x32xf32>
    %170 = arith.addf %168, %169 : vector<8x32xf32>
    %171 = math.tanh %170 : vector<8x32xf32>
    %172 = arith.mulf %165, %171 : vector<8x32xf32>
    %173 = tpu.concatenate %172, %153 in 1 : vector<8x32xf32>, vector<8x32xf32> -> vector<8x64xf32>
    %cst_58 = arith.constant dense<0.000000e+00> : vector<8x128xf32>
    %174 = tpu.matmul %173, %32, %cst_58 {dimension_numbers = #tpu.dot_dimension_numbers<[1], [0], [0], [1], [0, 0, 1, 1], [], []>} : vector<8x64xf32>, vector<64x128xf32>, vector<8x128xf32> -> vector<8x128xf32>
    %175 = arith.addf %174, %35 : vector<8x128xf32>
    %176 = vector.extract_strided_slice %175 {offsets = [0, 0], sizes = [8, 96], strides = [1, 1]} : vector<8x128xf32> to vector<8x96xf32>
    %177 = arith.negf %176 : vector<8x96xf32>
    %178 = math.exp %177 : vector<8x96xf32>
    %cst_59 = arith.constant 1.000000e+00 : f32
    %179 = vector.broadcast %cst_59 : f32 to vector<8x96xf32>
    %180 = arith.addf %179, %178 : vector<8x96xf32>
    %181 = arith.divf %179, %180 : vector<8x96xf32>
    %182 = vector.extract_strided_slice %181 {offsets = [0, 0], sizes = [8, 32], strides = [1, 1]} : vector<8x96xf32> to vector<8x32xf32>
    %183 = vector.extract_strided_slice %181 {offsets = [0, 32], sizes = [8, 32], strides = [1, 1]} : vector<8x96xf32> to vector<8x32xf32>
    %184 = vector.extract_strided_slice %181 {offsets = [0, 64], sizes = [8, 32], strides = [1, 1]} : vector<8x96xf32> to vector<8x32xf32>
    %185 = vector.extract_strided_slice %175 {offsets = [0, 96], sizes = [8, 32], strides = [1, 1]} : vector<8x128xf32> to vector<8x32xf32>
    %186 = math.tanh %185 : vector<8x32xf32>
    %187 = arith.mulf %183, %151 : vector<8x32xf32>
    %188 = arith.mulf %182, %186 : vector<8x32xf32>
    %189 = arith.addf %187, %188 : vector<8x32xf32>
    %190 = math.tanh %189 : vector<8x32xf32>
    %191 = arith.mulf %184, %190 : vector<8x32xf32>
    %c32 = arith.constant 32 : index
    %c0_60 = arith.constant 0 : index
    %192 = vector.load %arg17[%c32, %c0_60] : memref<64x128xf32, #tpu.memory_space<vmem>>, vector<8x128xf32>
    %cst_61 = arith.constant dense<0.000000e+00> : vector<8x128xf32>
    %193 = tpu.matmul %172, %31, %cst_61 {dimension_numbers = #tpu.dot_dimension_numbers<[1], [0], [0], [1], [0, 0, 1, 1], [], []>} : vector<8x32xf32>, vector<32x128xf32>, vector<8x128xf32> -> vector<8x128xf32>
    %194 = arith.addf %192, %193 : vector<8x128xf32>
    %195 = vector.extract_strided_slice %194 {offsets = [0, 0], sizes = [8, 96], strides = [1, 1]} : vector<8x128xf32> to vector<8x96xf32>
    %196 = arith.negf %195 : vector<8x96xf32>
    %197 = math.exp %196 : vector<8x96xf32>
    %cst_62 = arith.constant 1.000000e+00 : f32
    %198 = vector.broadcast %cst_62 : f32 to vector<8x96xf32>
    %199 = arith.addf %198, %197 : vector<8x96xf32>
    %200 = arith.divf %198, %199 : vector<8x96xf32>
    %201 = vector.extract_strided_slice %200 {offsets = [0, 0], sizes = [8, 32], strides = [1, 1]} : vector<8x96xf32> to vector<8x32xf32>
    %202 = vector.extract_strided_slice %200 {offsets = [0, 32], sizes = [8, 32], strides = [1, 1]} : vector<8x96xf32> to vector<8x32xf32>
    %203 = vector.extract_strided_slice %200 {offsets = [0, 64], sizes = [8, 32], strides = [1, 1]} : vector<8x96xf32> to vector<8x32xf32>
    %204 = vector.extract_strided_slice %194 {offsets = [0, 96], sizes = [8, 32], strides = [1, 1]} : vector<8x128xf32> to vector<8x32xf32>
    %205 = math.tanh %204 : vector<8x32xf32>
    %206 = arith.mulf %202, %170 : vector<8x32xf32>
    %207 = arith.mulf %201, %205 : vector<8x32xf32>
    %208 = arith.addf %206, %207 : vector<8x32xf32>
    %209 = math.tanh %208 : vector<8x32xf32>
    %210 = arith.mulf %203, %209 : vector<8x32xf32>
    %211 = tpu.concatenate %210, %191 in 1 : vector<8x32xf32>, vector<8x32xf32> -> vector<8x64xf32>
    %cst_63 = arith.constant dense<0.000000e+00> : vector<8x128xf32>
    %212 = tpu.matmul %211, %32, %cst_63 {dimension_numbers = #tpu.dot_dimension_numbers<[1], [0], [0], [1], [0, 0, 1, 1], [], []>} : vector<8x64xf32>, vector<64x128xf32>, vector<8x128xf32> -> vector<8x128xf32>
    %213 = arith.addf %212, %35 : vector<8x128xf32>
    %214 = vector.extract_strided_slice %213 {offsets = [0, 0], sizes = [8, 96], strides = [1, 1]} : vector<8x128xf32> to vector<8x96xf32>
    %215 = arith.negf %214 : vector<8x96xf32>
    %216 = math.exp %215 : vector<8x96xf32>
    %cst_64 = arith.constant 1.000000e+00 : f32
    %217 = vector.broadcast %cst_64 : f32 to vector<8x96xf32>
    %218 = arith.addf %217, %216 : vector<8x96xf32>
    %219 = arith.divf %217, %218 : vector<8x96xf32>
    %220 = vector.extract_strided_slice %219 {offsets = [0, 0], sizes = [8, 32], strides = [1, 1]} : vector<8x96xf32> to vector<8x32xf32>
    %221 = vector.extract_strided_slice %219 {offsets = [0, 32], sizes = [8, 32], strides = [1, 1]} : vector<8x96xf32> to vector<8x32xf32>
    %222 = vector.extract_strided_slice %219 {offsets = [0, 64], sizes = [8, 32], strides = [1, 1]} : vector<8x96xf32> to vector<8x32xf32>
    %223 = vector.extract_strided_slice %213 {offsets = [0, 96], sizes = [8, 32], strides = [1, 1]} : vector<8x128xf32> to vector<8x32xf32>
    %224 = math.tanh %223 : vector<8x32xf32>
    %225 = arith.mulf %221, %189 : vector<8x32xf32>
    %226 = arith.mulf %220, %224 : vector<8x32xf32>
    %227 = arith.addf %225, %226 : vector<8x32xf32>
    %228 = math.tanh %227 : vector<8x32xf32>
    %229 = arith.mulf %222, %228 : vector<8x32xf32>
    %c40 = arith.constant 40 : index
    %c0_65 = arith.constant 0 : index
    %230 = vector.load %arg17[%c40, %c0_65] : memref<64x128xf32, #tpu.memory_space<vmem>>, vector<8x128xf32>
    %cst_66 = arith.constant dense<0.000000e+00> : vector<8x128xf32>
    %231 = tpu.matmul %210, %31, %cst_66 {dimension_numbers = #tpu.dot_dimension_numbers<[1], [0], [0], [1], [0, 0, 1, 1], [], []>} : vector<8x32xf32>, vector<32x128xf32>, vector<8x128xf32> -> vector<8x128xf32>
    %232 = arith.addf %230, %231 : vector<8x128xf32>
    %233 = vector.extract_strided_slice %232 {offsets = [0, 0], sizes = [8, 96], strides = [1, 1]} : vector<8x128xf32> to vector<8x96xf32>
    %234 = arith.negf %233 : vector<8x96xf32>
    %235 = math.exp %234 : vector<8x96xf32>
    %cst_67 = arith.constant 1.000000e+00 : f32
    %236 = vector.broadcast %cst_67 : f32 to vector<8x96xf32>
    %237 = arith.addf %236, %235 : vector<8x96xf32>
    %238 = arith.divf %236, %237 : vector<8x96xf32>
    %239 = vector.extract_strided_slice %238 {offsets = [0, 0], sizes = [8, 32], strides = [1, 1]} : vector<8x96xf32> to vector<8x32xf32>
    %240 = vector.extract_strided_slice %238 {offsets = [0, 32], sizes = [8, 32], strides = [1, 1]} : vector<8x96xf32> to vector<8x32xf32>
    %241 = vector.extract_strided_slice %238 {offsets = [0, 64], sizes = [8, 32], strides = [1, 1]} : vector<8x96xf32> to vector<8x32xf32>
    %242 = vector.extract_strided_slice %232 {offsets = [0, 96], sizes = [8, 32], strides = [1, 1]} : vector<8x128xf32> to vector<8x32xf32>
    %243 = math.tanh %242 : vector<8x32xf32>
    %244 = arith.mulf %240, %208 : vector<8x32xf32>
    %245 = arith.mulf %239, %243 : vector<8x32xf32>
    %246 = arith.addf %244, %245 : vector<8x32xf32>
    %247 = math.tanh %246 : vector<8x32xf32>
    %248 = arith.mulf %241, %247 : vector<8x32xf32>
    %249 = tpu.concatenate %248, %229 in 1 : vector<8x32xf32>, vector<8x32xf32> -> vector<8x64xf32>
    %cst_68 = arith.constant dense<0.000000e+00> : vector<8x128xf32>
    %250 = tpu.matmul %249, %32, %cst_68 {dimension_numbers = #tpu.dot_dimension_numbers<[1], [0], [0], [1], [0, 0, 1, 1], [], []>} : vector<8x64xf32>, vector<64x128xf32>, vector<8x128xf32> -> vector<8x128xf32>
    %251 = arith.addf %250, %35 : vector<8x128xf32>
    %252 = vector.extract_strided_slice %251 {offsets = [0, 0], sizes = [8, 96], strides = [1, 1]} : vector<8x128xf32> to vector<8x96xf32>
    %253 = arith.negf %252 : vector<8x96xf32>
    %254 = math.exp %253 : vector<8x96xf32>
    %cst_69 = arith.constant 1.000000e+00 : f32
    %255 = vector.broadcast %cst_69 : f32 to vector<8x96xf32>
    %256 = arith.addf %255, %254 : vector<8x96xf32>
    %257 = arith.divf %255, %256 : vector<8x96xf32>
    %258 = vector.extract_strided_slice %257 {offsets = [0, 0], sizes = [8, 32], strides = [1, 1]} : vector<8x96xf32> to vector<8x32xf32>
    %259 = vector.extract_strided_slice %257 {offsets = [0, 32], sizes = [8, 32], strides = [1, 1]} : vector<8x96xf32> to vector<8x32xf32>
    %260 = vector.extract_strided_slice %257 {offsets = [0, 64], sizes = [8, 32], strides = [1, 1]} : vector<8x96xf32> to vector<8x32xf32>
    %261 = vector.extract_strided_slice %251 {offsets = [0, 96], sizes = [8, 32], strides = [1, 1]} : vector<8x128xf32> to vector<8x32xf32>
    %262 = math.tanh %261 : vector<8x32xf32>
    %263 = arith.mulf %259, %227 : vector<8x32xf32>
    %264 = arith.mulf %258, %262 : vector<8x32xf32>
    %265 = arith.addf %263, %264 : vector<8x32xf32>
    %266 = math.tanh %265 : vector<8x32xf32>
    %267 = arith.mulf %260, %266 : vector<8x32xf32>
    %c48 = arith.constant 48 : index
    %c0_70 = arith.constant 0 : index
    %268 = vector.load %arg17[%c48, %c0_70] : memref<64x128xf32, #tpu.memory_space<vmem>>, vector<8x128xf32>
    %cst_71 = arith.constant dense<0.000000e+00> : vector<8x128xf32>
    %269 = tpu.matmul %248, %31, %cst_71 {dimension_numbers = #tpu.dot_dimension_numbers<[1], [0], [0], [1], [0, 0, 1, 1], [], []>} : vector<8x32xf32>, vector<32x128xf32>, vector<8x128xf32> -> vector<8x128xf32>
    %270 = arith.addf %268, %269 : vector<8x128xf32>
    %271 = vector.extract_strided_slice %270 {offsets = [0, 0], sizes = [8, 96], strides = [1, 1]} : vector<8x128xf32> to vector<8x96xf32>
    %272 = arith.negf %271 : vector<8x96xf32>
    %273 = math.exp %272 : vector<8x96xf32>
    %cst_72 = arith.constant 1.000000e+00 : f32
    %274 = vector.broadcast %cst_72 : f32 to vector<8x96xf32>
    %275 = arith.addf %274, %273 : vector<8x96xf32>
    %276 = arith.divf %274, %275 : vector<8x96xf32>
    %277 = vector.extract_strided_slice %276 {offsets = [0, 0], sizes = [8, 32], strides = [1, 1]} : vector<8x96xf32> to vector<8x32xf32>
    %278 = vector.extract_strided_slice %276 {offsets = [0, 32], sizes = [8, 32], strides = [1, 1]} : vector<8x96xf32> to vector<8x32xf32>
    %279 = vector.extract_strided_slice %276 {offsets = [0, 64], sizes = [8, 32], strides = [1, 1]} : vector<8x96xf32> to vector<8x32xf32>
    %280 = vector.extract_strided_slice %270 {offsets = [0, 96], sizes = [8, 32], strides = [1, 1]} : vector<8x128xf32> to vector<8x32xf32>
    %281 = math.tanh %280 : vector<8x32xf32>
    %282 = arith.mulf %278, %246 : vector<8x32xf32>
    %283 = arith.mulf %277, %281 : vector<8x32xf32>
    %284 = arith.addf %282, %283 : vector<8x32xf32>
    %285 = math.tanh %284 : vector<8x32xf32>
    %286 = arith.mulf %279, %285 : vector<8x32xf32>
    %287 = tpu.concatenate %286, %267 in 1 : vector<8x32xf32>, vector<8x32xf32> -> vector<8x64xf32>
    %cst_73 = arith.constant dense<0.000000e+00> : vector<8x128xf32>
    %288 = tpu.matmul %287, %32, %cst_73 {dimension_numbers = #tpu.dot_dimension_numbers<[1], [0], [0], [1], [0, 0, 1, 1], [], []>} : vector<8x64xf32>, vector<64x128xf32>, vector<8x128xf32> -> vector<8x128xf32>
    %289 = arith.addf %288, %35 : vector<8x128xf32>
    %290 = vector.extract_strided_slice %289 {offsets = [0, 0], sizes = [8, 96], strides = [1, 1]} : vector<8x128xf32> to vector<8x96xf32>
    %291 = arith.negf %290 : vector<8x96xf32>
    %292 = math.exp %291 : vector<8x96xf32>
    %cst_74 = arith.constant 1.000000e+00 : f32
    %293 = vector.broadcast %cst_74 : f32 to vector<8x96xf32>
    %294 = arith.addf %293, %292 : vector<8x96xf32>
    %295 = arith.divf %293, %294 : vector<8x96xf32>
    %296 = vector.extract_strided_slice %295 {offsets = [0, 0], sizes = [8, 32], strides = [1, 1]} : vector<8x96xf32> to vector<8x32xf32>
    %297 = vector.extract_strided_slice %295 {offsets = [0, 32], sizes = [8, 32], strides = [1, 1]} : vector<8x96xf32> to vector<8x32xf32>
    %298 = vector.extract_strided_slice %295 {offsets = [0, 64], sizes = [8, 32], strides = [1, 1]} : vector<8x96xf32> to vector<8x32xf32>
    %299 = vector.extract_strided_slice %289 {offsets = [0, 96], sizes = [8, 32], strides = [1, 1]} : vector<8x128xf32> to vector<8x32xf32>
    %300 = math.tanh %299 : vector<8x32xf32>
    %301 = arith.mulf %297, %265 : vector<8x32xf32>
    %302 = arith.mulf %296, %300 : vector<8x32xf32>
    %303 = arith.addf %301, %302 : vector<8x32xf32>
    %304 = math.tanh %303 : vector<8x32xf32>
    %305 = arith.mulf %298, %304 : vector<8x32xf32>
    %c56 = arith.constant 56 : index
    %c0_75 = arith.constant 0 : index
    %306 = vector.load %arg17[%c56, %c0_75] : memref<64x128xf32, #tpu.memory_space<vmem>>, vector<8x128xf32>
    %cst_76 = arith.constant dense<0.000000e+00> : vector<8x128xf32>
    %307 = tpu.matmul %286, %31, %cst_76 {dimension_numbers = #tpu.dot_dimension_numbers<[1], [0], [0], [1], [0, 0, 1, 1], [], []>} : vector<8x32xf32>, vector<32x128xf32>, vector<8x128xf32> -> vector<8x128xf32>
    %308 = arith.addf %306, %307 : vector<8x128xf32>
    %309 = vector.extract_strided_slice %308 {offsets = [0, 0], sizes = [8, 96], strides = [1, 1]} : vector<8x128xf32> to vector<8x96xf32>
    %310 = arith.negf %309 : vector<8x96xf32>
    %311 = math.exp %310 : vector<8x96xf32>
    %cst_77 = arith.constant 1.000000e+00 : f32
    %312 = vector.broadcast %cst_77 : f32 to vector<8x96xf32>
    %313 = arith.addf %312, %311 : vector<8x96xf32>
    %314 = arith.divf %312, %313 : vector<8x96xf32>
    %315 = vector.extract_strided_slice %314 {offsets = [0, 0], sizes = [8, 32], strides = [1, 1]} : vector<8x96xf32> to vector<8x32xf32>
    %316 = vector.extract_strided_slice %314 {offsets = [0, 32], sizes = [8, 32], strides = [1, 1]} : vector<8x96xf32> to vector<8x32xf32>
    %317 = vector.extract_strided_slice %314 {offsets = [0, 64], sizes = [8, 32], strides = [1, 1]} : vector<8x96xf32> to vector<8x32xf32>
    %318 = vector.extract_strided_slice %308 {offsets = [0, 96], sizes = [8, 32], strides = [1, 1]} : vector<8x128xf32> to vector<8x32xf32>
    %319 = math.tanh %318 : vector<8x32xf32>
    %320 = arith.mulf %316, %284 : vector<8x32xf32>
    %321 = arith.mulf %315, %319 : vector<8x32xf32>
    %322 = arith.addf %320, %321 : vector<8x32xf32>
    %323 = math.tanh %322 : vector<8x32xf32>
    %324 = arith.mulf %317, %323 : vector<8x32xf32>
    %325 = tpu.concatenate %324, %305 in 1 : vector<8x32xf32>, vector<8x32xf32> -> vector<8x64xf32>
    %cst_78 = arith.constant dense<0.000000e+00> : vector<8x128xf32>
    %326 = tpu.matmul %325, %32, %cst_78 {dimension_numbers = #tpu.dot_dimension_numbers<[1], [0], [0], [1], [0, 0, 1, 1], [], []>} : vector<8x64xf32>, vector<64x128xf32>, vector<8x128xf32> -> vector<8x128xf32>
    %327 = arith.addf %326, %35 : vector<8x128xf32>
    %328 = vector.extract_strided_slice %327 {offsets = [0, 0], sizes = [8, 96], strides = [1, 1]} : vector<8x128xf32> to vector<8x96xf32>
    %329 = arith.negf %328 : vector<8x96xf32>
    %330 = math.exp %329 : vector<8x96xf32>
    %cst_79 = arith.constant 1.000000e+00 : f32
    %331 = vector.broadcast %cst_79 : f32 to vector<8x96xf32>
    %332 = arith.addf %331, %330 : vector<8x96xf32>
    %333 = arith.divf %331, %332 : vector<8x96xf32>
    %334 = vector.extract_strided_slice %333 {offsets = [0, 0], sizes = [8, 32], strides = [1, 1]} : vector<8x96xf32> to vector<8x32xf32>
    %335 = vector.extract_strided_slice %333 {offsets = [0, 32], sizes = [8, 32], strides = [1, 1]} : vector<8x96xf32> to vector<8x32xf32>
    %336 = vector.extract_strided_slice %333 {offsets = [0, 64], sizes = [8, 32], strides = [1, 1]} : vector<8x96xf32> to vector<8x32xf32>
    %337 = vector.extract_strided_slice %327 {offsets = [0, 96], sizes = [8, 32], strides = [1, 1]} : vector<8x128xf32> to vector<8x32xf32>
    %338 = math.tanh %337 : vector<8x32xf32>
    %339 = arith.mulf %335, %303 : vector<8x32xf32>
    %340 = arith.mulf %334, %338 : vector<8x32xf32>
    %341 = arith.addf %339, %340 : vector<8x32xf32>
    %342 = math.tanh %341 : vector<8x32xf32>
    %343 = arith.mulf %336, %342 : vector<8x32xf32>
    %344 = tpu.concatenate %77, %115, %153, %191, %229, %267, %305, %343 in 0 : vector<8x32xf32>, vector<8x32xf32>, vector<8x32xf32>, vector<8x32xf32>, vector<8x32xf32>, vector<8x32xf32>, vector<8x32xf32>, vector<8x32xf32> -> vector<64x32xf32>
    %c0_80 = arith.constant 0 : index
    %c0_81 = arith.constant 0 : index
    %345 = vector.load %arg14[%c0_80, %c0_81] : memref<32x16xf32, #tpu.memory_space<vmem>>, vector<32x16xf32>
    %cst_82 = arith.constant dense<0.000000e+00> : vector<64x16xf32>
    %346 = tpu.matmul %344, %345, %cst_82 {dimension_numbers = #tpu.dot_dimension_numbers<[1], [0], [0], [1], [0, 0, 1, 1], [], []>} : vector<64x32xf32>, vector<32x16xf32>, vector<64x16xf32> -> vector<64x16xf32>
    %c0_83 = arith.constant 0 : index
    %c0_84 = arith.constant 0 : index
    %347 = vector.load %arg15[%c0_83, %c0_84] : memref<1x16xf32, #tpu.memory_space<vmem>>, vector<1x16xf32>
    %348 = vector.broadcast %347 : vector<1x16xf32> to vector<64x16xf32>
    %349 = arith.addf %346, %348 : vector<64x16xf32>
    %c0_85 = arith.constant 0 : index
    %c0_86 = arith.constant 0 : index
    %350 = vector.load %arg16[%c0_85, %c0_86] : memref<64x16xf32, #tpu.memory_space<vmem>>, vector<64x16xf32>
    tpu.vector_store %arg16[%c0_85, %c0_86], %349 {strides = array<i32>} : memref<64x16xf32, #tpu.memory_space<vmem>>, vector<64x16xf32>,
    return
  }
}

</mosaic_0001>

<llo_original>
// kernel: decoder_forward.1
$region0: #{decoder_forward.1}
  #allocation0 [shape = 'u32[]', space=smem, size = 0x4, offset = 0x4, fixed_abs, tag = 'smem constant byte address 0x4 - core index']
  #allocation1 [shape = 'u32[144,128]{1,0:T(1,128)}', space=vmem, size = 0x12000, scoped, tag = 'internal scratch']
  #allocation2 [shape = 'f32[64,128]{1,0:T(8,128)}', space=vmem, size = 0x8000, scoped, tag = 'scratch operand']
  %s0 = inlined_call_operand.vmem [shape: f32[8,8], index: 0, kind: input, shape index: {}]
  %s1 = inlined_call_operand.vmem [shape: f32[64,16], index: 1, kind: input, shape index: {}]
  %s2 = inlined_call_operand.vmem [shape: f32[8,32], index: 2, kind: input, shape index: {}]
  %s3 = inlined_call_operand.vmem [shape: f32[1,32], index: 3, kind: input, shape index: {}]
  %s4 = inlined_call_operand.vmem [shape: f32[32,32], index: 4, kind: input, shape index: {}]
  %s5 = inlined_call_operand.vmem [shape: f32[1,32], index: 5, kind: input, shape index: {}]
  %s6 = inlined_call_operand.vmem [shape: f32[32,32], index: 6, kind: input, shape index: {}]
  %s7 = inlined_call_operand.vmem [shape: f32[1,32], index: 7, kind: input, shape index: {}]
  %s8 = inlined_call_operand.vmem [shape: f32[32,128], index: 8, kind: input, shape index: {}]
  %s9 = inlined_call_operand.vmem [shape: f32[16,128], index: 9, kind: input, shape index: {}]
  %s10 = inlined_call_operand.vmem [shape: f32[32,128], index: 10, kind: input, shape index: {}]
  %s11 = inlined_call_operand.vmem [shape: f32[1,128], index: 11, kind: input, shape index: {}]
  %s12 = inlined_call_operand.vmem [shape: f32[64,128], index: 12, kind: input, shape index: {}]
  %s13 = inlined_call_operand.vmem [shape: f32[1,128], index: 13, kind: input, shape index: {}]
  %s14 = inlined_call_operand.vmem [shape: f32[32,16], index: 14, kind: input, shape index: {}]
  %s15 = inlined_call_operand.vmem [shape: f32[1,16], index: 15, kind: input, shape index: {}]
  %s16 = inlined_call_operand.vmem [shape: f32[64,16], index: 16, kind: output, shape index: {}]
  %s17 = sld [smem:[#allocation0]]
  $region74: #{decoder_forward.1} parent=0
    _
  %s19 = ssub.s32 1, %s17
  %s20 = scalar_select 0, %s19, %s17
  // Predicated region
  $region2: #{decoder_forward.1} parent=0 // pred_check
    _
  $region3: #{decoder_forward.1} parent=0 // pred_check_branch
    %22 = sbr.rel (0) target = $region5
  $region4: #{decoder_forward.1} parent=0 // pred_region
    _
  $region5: #{decoder_forward.1} parent=0 // pred_fallthru
    _
  // Predicated region
  $region6: #{decoder_forward.1} parent=0 // pred_check
    _
  $region7: #{decoder_forward.1} parent=0 // pred_check_branch
    %24 = sbr.rel (0) target = $region9
  $region8: #{decoder_forward.1} parent=0 // pred_region
    _
  $region9: #{decoder_forward.1} parent=0 // pred_fallthru
    _
  // Predicated region
  $region10: #{decoder_forward.1} parent=0 // pred_check
    _
  $region11: #{decoder_forward.1} parent=0 // pred_check_branch
    %26 = sbr.rel (0) target = $region13
  $region12: #{decoder_forward.1} parent=0 // pred_region
    _
  $region13: #{decoder_forward.1} parent=0 // pred_fallthru
    _
  // Predicated region
  $region14: #{decoder_forward.1} parent=0 // pred_check
    _
  $region15: #{decoder_forward.1} parent=0 // pred_check_branch
    %28 = sbr.rel (0) target = $region17
  $region16: #{decoder_forward.1} parent=0 // pred_region
    _
  $region17: #{decoder_forward.1} parent=0 // pred_fallthru
    _
  // Predicated region
  $region18: #{decoder_forward.1} parent=0 // pred_check
    _
  $region19: #{decoder_forward.1} parent=0 // pred_check_branch
    %30 = sbr.rel (0) target = $region21
  $region20: #{decoder_forward.1} parent=0 // pred_region
    _
  $region21: #{decoder_forward.1} parent=0 // pred_fallthru
    _
  // Predicated region
  $region22: #{decoder_forward.1} parent=0 // pred_check
    _
  $region23: #{decoder_forward.1} parent=0 // pred_check_branch
    %32 = sbr.rel (0) target = $region25
  $region24: #{decoder_forward.1} parent=0 // pred_region
    _
  $region25: #{decoder_forward.1} parent=0 // pred_fallthru
    _
  // Predicated region
  $region26: #{decoder_forward.1} parent=0 // pred_check
    _
  $region27: #{decoder_forward.1} parent=0 // pred_check_branch
    %34 = sbr.rel (0) target = $region29
  $region28: #{decoder_forward.1} parent=0 // pred_region
    _
  $region29: #{decoder_forward.1} parent=0 // pred_fallthru
    _
  // Predicated region
  $region30: #{decoder_forward.1} parent=0 // pred_check
    _
  $region31: #{decoder_forward.1} parent=0 // pred_check_branch
    %36 = sbr.rel (0) target = $region33
  $region32: #{decoder_forward.1} parent=0 // pred_region
    _
  $region33: #{decoder_forward.1} parent=0 // pred_fallthru
    _
  // Predicated region
  $region34: #{decoder_forward.1} parent=0 // pred_check
    _
  $region35: #{decoder_forward.1} parent=0 // pred_check_branch
    %38 = sbr.rel (0) target = $region37
  $region36: #{decoder_forward.1} parent=0 // pred_region
    _
  $region37: #{decoder_forward.1} parent=0 // pred_fallthru
    _
  // Predicated region
  $region38: #{decoder_forward.1} parent=0 // pred_check
    _
  $region39: #{decoder_forward.1} parent=0 // pred_check_branch
    %40 = sbr.rel (0) target = $region41
  $region40: #{decoder_forward.1} parent=0 // pred_region
    _
  $region41: #{decoder_forward.1} parent=0 // pred_fallthru
    _
  // Predicated region
  $region42: #{decoder_forward.1} parent=0 // pred_check
    _
  $region43: #{decoder_forward.1} parent=0 // pred_check_branch
    %42 = sbr.rel (0) target = $region45
  $region44: #{decoder_forward.1} parent=0 // pred_region
    _
  $region45: #{decoder_forward.1} parent=0 // pred_fallthru
    _
  // Predicated region
  $region46: #{decoder_forward.1} parent=0 // pred_check
    _
  $region47: #{decoder_forward.1} parent=0 // pred_check_branch
    %44 = sbr.rel (0) target = $region49
  $region48: #{decoder_forward.1} parent=0 // pred_region
    _
  $region49: #{decoder_forward.1} parent=0 // pred_fallthru
    _
  // Predicated region
  $region50: #{decoder_forward.1} parent=0 // pred_check
    _
  $region51: #{decoder_forward.1} parent=0 // pred_check_branch
    %46 = sbr.rel (0) target = $region53
  $region52: #{decoder_forward.1} parent=0 // pred_region
    _
  $region53: #{decoder_forward.1} parent=0 // pred_fallthru
    _
  // Predicated region
  $region54: #{decoder_forward.1} parent=0 // pred_check
    _
  $region55: #{decoder_forward.1} parent=0 // pred_check_branch
    %48 = sbr.rel (0) target = $region57
  $region56: #{decoder_forward.1} parent=0 // pred_region
    _
  $region57: #{decoder_forward.1} parent=0 // pred_fallthru
    _
  // Predicated region
  $region58: #{decoder_forward.1} parent=0 // pred_check
    _
  $region59: #{decoder_forward.1} parent=0 // pred_check_branch
    %50 = sbr.rel (0) target = $region61
  $region60: #{decoder_forward.1} parent=0 // pred_region
    _
  $region61: #{decoder_forward.1} parent=0 // pred_fallthru
    _
  // Predicated region
  $region62: #{decoder_forward.1} parent=0 // pred_check
    _
  $region63: #{decoder_forward.1} parent=0 // pred_check_branch
    %52 = sbr.rel (0) target = $region65
  $region64: #{decoder_forward.1} parent=0 // pred_region
    _
  $region65: #{decoder_forward.1} parent=0 // pred_fallthru
    _
  %v53 = vld [vmem:[%s0] sm:$0xff]
  %v54 = vld [vmem:[%s2] sm:$0xff]
  %v55 = vld [vmem:[%s3] sm:$0x1]
  %v57 = vlaneseq
  %v58 = vshrl.u32 %v57, 7
  %v59 = vsub.s32 0, %v58
  %v60 = vrot.slane %v55, %v59
  %vm62 = vcmask 64512
  %v64 = vsel %vm62, %v53, 0
  %66 = vmatprep.subr.mxu0 0.0
  %67 = vmatpush1.msra.mxu0 %v54
  %68 = vmatprep.subr.mxu0 0.0
  %69 = vmatpush1.msra.mxu0 0.0
  %70 = vmatprep.subr.mxu0 0.0
  %71 = vmatpush1.msra.mxu0 0.0
  %72 = vmatprep.subr.mxu0 0.0
  %73 = vmatpush1.msra.mxu0 0.0
  %74 = vmatprep.subr.mxu0 0.0
  %75 = vmatpush1.msra.mxu0 0.0
  %76 = vmatprep.subr.mxu0 0.0
  %77 = vmatpush1.msra.mxu0 0.0
  %78 = vmatprep.subr.mxu0 0.0
  %79 = vmatpush1.msra.mxu0 0.0
  %80 = vmatprep.subr.mxu0 0.0
  %81 = vmatpush1.msra.mxu0 0.0
  %82 = vmatprep.subr.mxu0 0.0
  %83 = vmatpush1.msra.mxu0 0.0
  %84 = vmatprep.subr.mxu0 0.0
  %85 = vmatpush1.msra.mxu0 0.0
  %86 = vmatprep.subr.mxu0 0.0
  %87 = vmatpush1.msra.mxu0 0.0
  %88 = vmatprep.subr.mxu0 0.0
  %89 = vmatpush1.msra.mxu0 0.0
  %90 = vmatprep.subr.mxu0 0.0
  %91 = vmatpush1.msra.mxu0 0.0
  %92 = vmatprep.subr.mxu0 0.0
  %93 = vmatpush1.msra.mxu0 0.0
  %94 = vmatprep.subr.mxu0 0.0
  %95 = vmatpush1.msra.mxu0 0.0
  %96 = vmatprep.subr.mxu0 0.0
  %97 = vmatpush1.msra.mxu0 0.0
  %98 = vmatprep.subr.mxu0 0.0
  %99 = vmatpush1.msra.mxu0 0.0
  %100 = vmatprep.subr.mxu0 0.0
  %101 = vmatpush1.msra.mxu0 0.0
  %102 = vmatprep.subr.mxu0 0.0
  %103 = vmatpush1.msra.mxu0 0.0
  %104 = vmatprep.subr.mxu0 0.0
  %105 = vmatpush1.msra.mxu0 0.0
  %106 = vmatprep.subr.mxu0 0.0
  %107 = vmatpush1.msra.mxu0 0.0
  %108 = vmatprep.subr.mxu0 0.0
  %109 = vmatpush1.msra.mxu0 0.0
  %110 = vmatprep.subr.mxu0 0.0
  %111 = vmatpush1.msra.mxu0 0.0
  %112 = vmatprep.subr.mxu0 0.0
  %113 = vmatpush1.msra.mxu0 0.0
  %114 = vmatprep.subr.mxu0 0.0
  %115 = vmatpush1.msra.mxu0 0.0
  %116 = vmatprep.subr.mxu0 0.0
  %117 = vmatpush1.msra.mxu0 0.0
  %118 = vmatprep.subr.mxu0 0.0
  %119 = vmatpush1.msra.mxu0 0.0
  %120 = vmatprep.subr.mxu0 0.0
  %121 = vmatpush1.msra.mxu0 0.0
  %122 = vmatprep.subr.mxu0 0.0
  %123 = vmatpush1.msra.mxu0 0.0
  %124 = vmatprep.subr.mxu0 0.0
  %125 = vmatpush1.msra.mxu0 0.0
  %126 = vmatprep.subr.mxu0 0.0
  %127 = vmatpush1.msra.mxu0 0.0
  %128 = vmatprep.subr.mxu0 0.0
  %129 = vmatpush1.msra.mxu0 0.0
  %130 = vmatprep.mubr.f32.mxu0 0.0
  %131 = vmatmul.mubr.f32.gmra.mrb[0].mxu0 %v64
  %v132 = vpop.f32.mrb[0].mxu0
  %v133 = vadd.f32 %v60, %v132
  %v134 = vpop.f32.mrb[0].mxu0
  %135 = vdwg.mxu0
  %v136 = vld [vmem:[%s4] sm:$0xff]
  %v137 = vld [vmem:[%s4 + $0x8] sm:$0xff]
  %v138 = vld [vmem:[%s4 + $0x10] sm:$0xff]
  %v139 = vld [vmem:[%s4 + $0x18] sm:$0xff]
  %v140 = vld [vmem:[%s5] sm:$0x1]
  %v142 = vlaneseq
  %v143 = vshrl.u32 %v142, 7
  %v144 = vsub.s32 0, %v143
  %v145 = vrot.slane %v140, %v144
  %vm147 = vcmask 261120
  %v149 = vsel %vm147, %v133, 0
  %151 = vmatprep.subr.mxu0 0.0
  %152 = vmatpush1.msra.mxu0 %v136
  %153 = vmatprep.subr.mxu0 0.0
  %154 = vmatpush1.msra.mxu0 %v137
  %155 = vmatprep.subr.mxu0 0.0
  %156 = vmatpush1.msra.mxu0 %v138
  %157 = vmatprep.subr.mxu0 0.0
  %158 = vmatpush1.msra.mxu0 %v139
  %159 = vmatprep.subr.mxu0 0.0
  %160 = vmatpush1.msra.mxu0 0.0
  %161 = vmatprep.subr.mxu0 0.0
  %162 = vmatpush1.msra.mxu0 0.0
  %163 = vmatprep.subr.mxu0 0.0
  %164 = vmatpush1.msra.mxu0 0.0
  %165 = vmatprep.subr.mxu0 0.0
  %166 = vmatpush1.msra.mxu0 0.0
  %167 = vmatprep.subr.mxu0 0.0
  %168 = vmatpush1.msra.mxu0 0.0
  %169 = vmatprep.subr.mxu0 0.0
  %170 = vmatpush1.msra.mxu0 0.0
  %171 = vmatprep.subr.mxu0 0.0
  %172 = vmatpush1.msra.mxu0 0.0
  %173 = vmatprep.subr.mxu0 0.0
  %174 = vmatpush1.msra.mxu0 0.0
  %175 = vmatprep.subr.mxu0 0.0
  %176 = vmatpush1.msra.mxu0 0.0
  %177 = vmatprep.subr.mxu0 0.0
  %178 = vmatpush1.msra.mxu0 0.0
  %179 = vmatprep.subr.mxu0 0.0
  %180 = vmatpush1.msra.mxu0 0.0
  %181 = vmatprep.subr.mxu0 0.0
  %182 = vmatpush1.msra.mxu0 0.0
  %183 = vmatprep.subr.mxu0 0.0
  %184 = vmatpush1.msra.mxu0 0.0
  %185 = vmatprep.subr.mxu0 0.0
  %186 = vmatpush1.msra.mxu0 0.0
  %187 = vmatprep.subr.mxu0 0.0
  %188 = vmatpush1.msra.mxu0 0.0
  %189 = vmatprep.subr.mxu0 0.0
  %190 = vmatpush1.msra.mxu0 0.0
  %191 = vmatprep.subr.mxu0 0.0
  %192 = vmatpush1.msra.mxu0 0.0
  %193 = vmatprep.subr.mxu0 0.0
  %194 = vmatpush1.msra.mxu0 0.0
  %195 = vmatprep.subr.mxu0 0.0
  %196 = vmatpush1.msra.mxu0 0.0
  %197 = vmatprep.subr.mxu0 0.0
  %198 = vmatpush1.msra.mxu0 0.0
  %199 = vmatprep.subr.mxu0 0.0
  %200 = vmatpush1.msra.mxu0 0.0
  %201 = vmatprep.subr.mxu0 0.0
  %202 = vmatpush1.msra.mxu0 0.0
  %203 = vmatprep.subr.mxu0 0.0
  %204 = vmatpush1.msra.mxu0 0.0
  %205 = vmatprep.subr.mxu0 0.0
  %206 = vmatpush1.msra.mxu0 0.0
  %207 = vmatprep.subr.mxu0 0.0
  %208 = vmatpush1.msra.mxu0 0.0
  %209 = vmatprep.subr.mxu0 0.0
  %210 = vmatpush1.msra.mxu0 0.0
  %211 = vmatprep.subr.mxu0 0.0
  %212 = vmatpush1.msra.mxu0 0.0
  %213 = vmatprep.subr.mxu0 0.0
  %214 = vmatpush1.msra.mxu0 0.0
  %215 = vmatprep.mubr.f32.mxu0 0.0
  %216 = vmatmul.mubr.f32.gmra.mrb[0].mxu0 %v149
  %v217 = vpop.f32.mrb[0].mxu0
  %v218 = vadd.f32 %v145, %v217
  %v219 = vpop.f32.mrb[0].mxu0
  %220 = vdwg.mxu0
  %v221 = vmax.f32 %v218, 0.0
  %v222 = vld [vmem:[%s6] sm:$0xff]
  %v223 = vld [vmem:[%s6 + $0x8] sm:$0xff]
  %v224 = vld [vmem:[%s6 + $0x10] sm:$0xff]
  %v225 = vld [vmem:[%s6 + $0x18] sm:$0xff]
  %v226 = vld [vmem:[%s7] sm:$0x1]
  %v228 = vlaneseq
  %v229 = vshrl.u32 %v228, 7
  %v230 = vsub.s32 0, %v229
  %v231 = vrot.slane %v226, %v230
  %v234 = vsel %vm147, %v221, 0
  %236 = vmatprep.subr.mxu0 0.0
  %237 = vmatpush1.msra.mxu0 %v222
  %238 = vmatprep.subr.mxu0 0.0
  %239 = vmatpush1.msra.mxu0 %v223
  %240 = vmatprep.subr.mxu0 0.0
  %241 = vmatpush1.msra.mxu0 %v224
  %242 = vmatprep.subr.mxu0 0.0
  %243 = vmatpush1.msra.mxu0 %v225
  %244 = vmatprep.subr.mxu0 0.0
  %245 = vmatpush1.msra.mxu0 0.0
  %246 = vmatprep.subr.mxu0 0.0
  %247 = vmatpush1.msra.mxu0 0.0
  %248 = vmatprep.subr.mxu0 0.0
  %249 = vmatpush1.msra.mxu0 0.0
  %250 = vmatprep.subr.mxu0 0.0
  %251 = vmatpush1.msra.mxu0 0.0
  %252 = vmatprep.subr.mxu0 0.0
  %253 = vmatpush1.msra.mxu0 0.0
  %254 = vmatprep.subr.mxu0 0.0
  %255 = vmatpush1.msra.mxu0 0.0
  %256 = vmatprep.subr.mxu0 0.0
  %257 = vmatpush1.msra.mxu0 0.0
  %258 = vmatprep.subr.mxu0 0.0
  %259 = vmatpush1.msra.mxu0 0.0
  %260 = vmatprep.subr.mxu0 0.0
  %261 = vmatpush1.msra.mxu0 0.0
  %262 = vmatprep.subr.mxu0 0.0
  %263 = vmatpush1.msra.mxu0 0.0
  %264 = vmatprep.subr.mxu0 0.0
  %265 = vmatpush1.msra.mxu0 0.0
  %266 = vmatprep.subr.mxu0 0.0
  %267 = vmatpush1.msra.mxu0 0.0
  %268 = vmatprep.subr.mxu0 0.0
  %269 = vmatpush1.msra.mxu0 0.0
  %270 = vmatprep.subr.mxu0 0.0
  %271 = vmatpush1.msra.mxu0 0.0
  %272 = vmatprep.subr.mxu0 0.0
  %273 = vmatpush1.msra.mxu0 0.0
  %274 = vmatprep.subr.mxu0 0.0
  %275 = vmatpush1.msra.mxu0 0.0
  %276 = vmatprep.subr.mxu0 0.0
  %277 = vmatpush1.msra.mxu0 0.0
  %278 = vmatprep.subr.mxu0 0.0
  %279 = vmatpush1.msra.mxu0 0.0
  %280 = vmatprep.subr.mxu0 0.0
  %281 = vmatpush1.msra.mxu0 0.0
  %282 = vmatprep.subr.mxu0 0.0
  %283 = vmatpush1.msra.mxu0 0.0
  %284 = vmatprep.subr.mxu0 0.0
  %285 = vmatpush1.msra.mxu0 0.0
  %286 = vmatprep.subr.mxu0 0.0
  %287 = vmatpush1.msra.mxu0 0.0
  %288 = vmatprep.subr.mxu0 0.0
  %289 = vmatpush1.msra.mxu0 0.0
  %290 = vmatprep.subr.mxu0 0.0
  %291 = vmatpush1.msra.mxu0 0.0
  %292 = vmatprep.subr.mxu0 0.0
  %293 = vmatpush1.msra.mxu0 0.0
  %294 = vmatprep.subr.mxu0 0.0
  %295 = vmatpush1.msra.mxu0 0.0
  %296 = vmatprep.subr.mxu0 0.0
  %297 = vmatpush1.msra.mxu0 0.0
  %298 = vmatprep.subr.mxu0 0.0
  %299 = vmatpush1.msra.mxu0 0.0
  %300 = vmatprep.mubr.f32.mxu0 0.0
  %301 = vmatmul.mubr.f32.gmra.mrb[0].mxu0 %v234
  %v302 = vpop.f32.mrb[0].mxu0
  %v303 = vadd.f32 %v231, %v302
  %v304 = vpop.f32.mrb[0].mxu0
  %305 = vdwg.mxu0
  %v306 = vmax.f32 %v303, 0.0
  %v307 = vld [vmem:[%s8] sm:$0xff]
  %v308 = vld [vmem:[%s8 + $0x8] sm:$0xff]
  %v309 = vld [vmem:[%s8 + $0x10] sm:$0xff]
  %v310 = vld [vmem:[%s8 + $0x18] sm:$0xff]
  %v311 = vld [vmem:[%s11] sm:$0x1]
  %v313 = vlaneseq
  %v314 = vshrl.u32 %v313, 7
  %v315 = vsub.s32 0, %v314
  %v316 = vrot.slane %v311, %v315
  %v319 = vsel %vm147, %v306, 0
  %321 = vmatprep.subr.mxu0 0.0
  %322 = vmatpush1.msra.mxu0 %v307
  %323 = vmatprep.subr.mxu0 0.0
  %324 = vmatpush1.msra.mxu0 %v308
  %325 = vmatprep.subr.mxu0 0.0
  %326 = vmatpush1.msra.mxu0 %v309
  %327 = vmatprep.subr.mxu0 0.0
  %328 = vmatpush1.msra.mxu0 %v310
  %329 = vmatprep.subr.mxu0 0.0
  %330 = vmatpush1.msra.mxu0 0.0
  %331 = vmatprep.subr.mxu0 0.0
  %332 = vmatpush1.msra.mxu0 0.0
  %333 = vmatprep.subr.mxu0 0.0
  %334 = vmatpush1.msra.mxu0 0.0
  %335 = vmatprep.subr.mxu0 0.0
  %336 = vmatpush1.msra.mxu0 0.0
  %337 = vmatprep.subr.mxu0 0.0
  %338 = vmatpush1.msra.mxu0 0.0
  %339 = vmatprep.subr.mxu0 0.0
  %340 = vmatpush1.msra.mxu0 0.0
  %341 = vmatprep.subr.mxu0 0.0
  %342 = vmatpush1.msra.mxu0 0.0
  %343 = vmatprep.subr.mxu0 0.0
  %344 = vmatpush1.msra.mxu0 0.0
  %345 = vmatprep.subr.mxu0 0.0
  %346 = vmatpush1.msra.mxu0 0.0
  %347 = vmatprep.subr.mxu0 0.0
  %348 = vmatpush1.msra.mxu0 0.0
  %349 = vmatprep.subr.mxu0 0.0
  %350 = vmatpush1.msra.mxu0 0.0
  %351 = vmatprep.subr.mxu0 0.0
  %352 = vmatpush1.msra.mxu0 0.0
  %353 = vmatprep.subr.mxu0 0.0
  %354 = vmatpush1.msra.mxu0 0.0
  %355 = vmatprep.subr.mxu0 0.0
  %356 = vmatpush1.msra.mxu0 0.0
  %357 = vmatprep.subr.mxu0 0.0
  %358 = vmatpush1.msra.mxu0 0.0
  %359 = vmatprep.subr.mxu0 0.0
  %360 = vmatpush1.msra.mxu0 0.0
  %361 = vmatprep.subr.mxu0 0.0
  %362 = vmatpush1.msra.mxu0 0.0
  %363 = vmatprep.subr.mxu0 0.0
  %364 = vmatpush1.msra.mxu0 0.0
  %365 = vmatprep.subr.mxu0 0.0
  %366 = vmatpush1.msra.mxu0 0.0
  %367 = vmatprep.subr.mxu0 0.0
  %368 = vmatpush1.msra.mxu0 0.0
  %369 = vmatprep.subr.mxu0 0.0
  %370 = vmatpush1.msra.mxu0 0.0
  %371 = vmatprep.subr.mxu0 0.0
  %372 = vmatpush1.msra.mxu0 0.0
  %373 = vmatprep.subr.mxu0 0.0
  %374 = vmatpush1.msra.mxu0 0.0
  %375 = vmatprep.subr.mxu0 0.0
  %376 = vmatpush1.msra.mxu0 0.0
  %377 = vmatprep.subr.mxu0 0.0
  %378 = vmatpush1.msra.mxu0 0.0
  %379 = vmatprep.subr.mxu0 0.0
  %380 = vmatpush1.msra.mxu0 0.0
  %381 = vmatprep.subr.mxu0 0.0
  %382 = vmatpush1.msra.mxu0 0.0
  %383 = vmatprep.subr.mxu0 0.0
  %384 = vmatpush1.msra.mxu0 0.0
  %385 = vmatprep.mubr.f32.mxu0 0.0
  %386 = vmatmul.mubr.f32.gmra.mrb[0].mxu0 %v319
  %v387 = vpop.f32.mrb[0].mxu0
  %v388 = vadd.f32 %v316, %v387
  %v389 = vpop.f32.mrb[0].mxu0
  %390 = vdwg.mxu0
  %v391 = vld [vmem:[%s1] sm:$0xff]
  %v392 = vld [vmem:[%s1 + $0x8] sm:$0xff]
  %v393 = vld [vmem:[%s1 + $0x10] sm:$0xff]
  %v394 = vld [vmem:[%s1 + $0x18] sm:$0xff]
  %v395 = vld [vmem:[%s1 + $0x20] sm:$0xff]
  %v396 = vld [vmem:[%s1 + $0x28] sm:$0xff]
  %v397 = vld [vmem:[%s1 + $0x30] sm:$0xff]
  %v398 = vld [vmem:[%s1 + $0x38] sm:$0xff]
  %v399 = vld [vmem:[%s9] sm:$0xff]
  %v400 = vld [vmem:[%s9 + $0x8] sm:$0xff]
  %vm401 = vcmask 130048
  %v403 = vsel %vm401, %v391, 0
  %v406 = vsel %vm401, %v392, 0
  %v409 = vsel %vm401, %v393, 0
  %v412 = vsel %vm401, %v394, 0
  %v415 = vsel %vm401, %v395, 0
  %v418 = vsel %vm401, %v396, 0
  %v421 = vsel %vm401, %v397, 0
  %v424 = vsel %vm401, %v398, 0
  %426 = vmatprep.subr.mxu0 0.0
  %427 = vmatpush1.msra.mxu0 %v399
  %428 = vmatprep.subr.mxu0 0.0
  %429 = vmatpush1.msra.mxu0 %v400
  %430 = vmatprep.subr.mxu0 0.0
  %431 = vmatpush1.msra.mxu0 0.0
  %432 = vmatprep.subr.mxu0 0.0
  %433 = vmatpush1.msra.mxu0 0.0
  %434 = vmatprep.subr.mxu0 0.0
  %435 = vmatpush1.msra.mxu0 0.0
  %436 = vmatprep.subr.mxu0 0.0
  %437 = vmatpush1.msra.mxu0 0.0
  %438 = vmatprep.subr.mxu0 0.0
  %439 = vmatpush1.msra.mxu0 0.0
  %440 = vmatprep.subr.mxu0 0.0
  %441 = vmatpush1.msra.mxu0 0.0
  %442 = vmatprep.subr.mxu0 0.0
  %443 = vmatpush1.msra.mxu0 0.0
  %444 = vmatprep.subr.mxu0 0.0
  %445 = vmatpush1.msra.mxu0 0.0
  %446 = vmatprep.subr.mxu0 0.0
  %447 = vmatpush1.msra.mxu0 0.0
  %448 = vmatprep.subr.mxu0 0.0
  %449 = vmatpush1.msra.mxu0 0.0
  %450 = vmatprep.subr.mxu0 0.0
  %451 = vmatpush1.msra.mxu0 0.0
  %452 = vmatprep.subr.mxu0 0.0
  %453 = vmatpush1.msra.mxu0 0.0
  %454 = vmatprep.subr.mxu0 0.0
  %455 = vmatpush1.msra.mxu0 0.0
  %456 = vmatprep.subr.mxu0 0.0
  %457 = vmatpush1.msra.mxu0 0.0
  %458 = vmatprep.subr.mxu0 0.0
  %459 = vmatpush1.msra.mxu0 0.0
  %460 = vmatprep.subr.mxu0 0.0
  %461 = vmatpush1.msra.mxu0 0.0
  %462 = vmatprep.subr.mxu0 0.0
  %463 = vmatpush1.msra.mxu0 0.0
  %464 = vmatprep.subr.mxu0 0.0
  %465 = vmatpush1.msra.mxu0 0.0
  %466 = vmatprep.subr.mxu0 0.0
  %467 = vmatpush1.msra.mxu0 0.0
  %468 = vmatprep.subr.mxu0 0.0
  %469 = vmatpush1.msra.mxu0 0.0
  %470 = vmatprep.subr.mxu0 0.0
  %471 = vmatpush1.msra.mxu0 0.0
  %472 = vmatprep.subr.mxu0 0.0
  %473 = vmatpush1.msra.mxu0 0.0
  %474 = vmatprep.subr.mxu0 0.0
  %475 = vmatpush1.msra.mxu0 0.0
  %476 = vmatprep.subr.mxu0 0.0
  %477 = vmatpush1.msra.mxu0 0.0
  %478 = vmatprep.subr.mxu0 0.0
  %479 = vmatpush1.msra.mxu0 0.0
  %480 = vmatprep.subr.mxu0 0.0
  %481 = vmatpush1.msra.mxu0 0.0
  %482 = vmatprep.subr.mxu0 0.0
  %483 = vmatpush1.msra.mxu0 0.0
  %484 = vmatprep.subr.mxu0 0.0
  %485 = vmatpush1.msra.mxu0 0.0
  %486 = vmatprep.subr.mxu0 0.0
  %487 = vmatpush1.msra.mxu0 0.0
  %488 = vmatprep.subr.mxu0 0.0
  %489 = vmatpush1.msra.mxu0 0.0
  %490 = vmatprep.mubr.f32.mxu0 0.0
  %491 = vmatmul.mubr.f32.gmra.mrb[0].mxu0 %v403
  %v492 = vpop.f32.mrb[0].mxu0
  %v493 = vadd.f32 %v388, %v492
  %v494 = vpop.f32.mrb[0].mxu0
  %495 = vmatprep.mubr.f32.mxu0 0.0
  %496 = vmatmul.mubr.f32.gmra.mrb[0].mxu0 %v406
  %v497 = vpop.f32.mrb[0].mxu0
  %v498 = vadd.f32 %v388, %v497
  %v499 = vpop.f32.mrb[0].mxu0
  %500 = vmatprep.mubr.f32.mxu0 0.0
  %501 = vmatmul.mubr.f32.gmra.mrb[0].mxu0 %v409
  %v502 = vpop.f32.mrb[0].mxu0
  %v503 = vadd.f32 %v388, %v502
  %v504 = vpop.f32.mrb[0].mxu0
  %505 = vmatprep.mubr.f32.mxu0 0.0
  %506 = vmatmul.mubr.f32.gmra.mrb[0].mxu0 %v412
  %v507 = vpop.f32.mrb[0].mxu0
  %v508 = vadd.f32 %v388, %v507
  %v509 = vpop.f32.mrb[0].mxu0
  %510 = vmatprep.mubr.f32.mxu0 0.0
  %511 = vmatmul.mubr.f32.gmra.mrb[0].mxu0 %v415
  %v512 = vpop.f32.mrb[0].mxu0
  %v513 = vadd.f32 %v388, %v512
  %v514 = vpop.f32.mrb[0].mxu0
  %515 = vmatprep.mubr.f32.mxu0 0.0
  %516 = vmatmul.mubr.f32.gmra.mrb[0].mxu0 %v418
  %v517 = vpop.f32.mrb[0].mxu0
  %v518 = vadd.f32 %v388, %v517
  %v519 = vpop.f32.mrb[0].mxu0
  %520 = vmatprep.mubr.f32.mxu0 0.0
  %521 = vmatmul.mubr.f32.gmra.mrb[0].mxu0 %v421
  %v522 = vpop.f32.mrb[0].mxu0
  %v523 = vadd.f32 %v388, %v522
  %v524 = vpop.f32.mrb[0].mxu0
  %525 = vmatprep.mubr.f32.mxu0 0.0
  %526 = vmatmul.mubr.f32.gmra.mrb[0].mxu0 %v424
  %v527 = vpop.f32.mrb[0].mxu0
  %v528 = vadd.f32 %v388, %v527
  %v529 = vpop.f32.mrb[0].mxu0
  %530 = vdwg.mxu0
  %531 = vst [vmem:[#allocation2] sm:$0xff] %v493
  %532 = vst [vmem:[#allocation2 + $0x8] sm:$0xff] %v498
  %533 = vst [vmem:[#allocation2 + $0x10] sm:$0xff] %v503
  %534 = vst [vmem:[#allocation2 + $0x18] sm:$0xff] %v508
  %535 = vst [vmem:[#allocation2 + $0x20] sm:$0xff] %v513
  %536 = vst [vmem:[#allocation2 + $0x28] sm:$0xff] %v518
  %537 = vst [vmem:[#allocation2 + $0x30] sm:$0xff] %v523
  %538 = vst [vmem:[#allocation2 + $0x38] sm:$0xff] %v528
  %v539 = vld [vmem:[%s10] sm:$0xff]
  %v540 = vld [vmem:[%s10 + $0x8] sm:$0xff]
  %v541 = vld [vmem:[%s10 + $0x10] sm:$0xff]
  %v542 = vld [vmem:[%s10 + $0x18] sm:$0xff]
  %v543 = vld [vmem:[%s12] sm:$0xff]
  %v544 = vld [vmem:[%s12 + $0x8] sm:$0xff]
  %v545 = vld [vmem:[%s12 + $0x10] sm:$0xff]
  %v546 = vld [vmem:[%s12 + $0x18] sm:$0xff]
  %v547 = vld [vmem:[%s12 + $0x20] sm:$0xff]
  %v548 = vld [vmem:[%s12 + $0x28] sm:$0xff]
  %v549 = vld [vmem:[%s12 + $0x30] sm:$0xff]
  %v550 = vld [vmem:[%s12 + $0x38] sm:$0xff]
  %v551 = vld [vmem:[%s13] sm:$0x1]
  %v553 = vlaneseq
  %v554 = vshrl.u32 %v553, 7
  %v555 = vsub.s32 0, %v554
  %v556 = vrot.slane %v551, %v555
  %v558 = vld [vmem:[#allocation2] sm:$0xff]
  %v560 = vsel %vm147, 0.0, 0
  %562 = vmatprep.subr.mxu0 0.0
  %563 = vmatpush1.msra.mxu0 %v539
  %564 = vmatprep.subr.mxu0 0.0
  %565 = vmatpush1.msra.mxu0 %v540
  %566 = vmatprep.subr.mxu0 0.0
  %567 = vmatpush1.msra.mxu0 %v541
  %568 = vmatprep.subr.mxu0 0.0
  %569 = vmatpush1.msra.mxu0 %v542
  %570 = vmatprep.subr.mxu0 0.0
  %571 = vmatpush1.msra.mxu0 0.0
  %572 = vmatprep.subr.mxu0 0.0
  %573 = vmatpush1.msra.mxu0 0.0
  %574 = vmatprep.subr.mxu0 0.0
  %575 = vmatpush1.msra.mxu0 0.0
  %576 = vmatprep.subr.mxu0 0.0
  %577 = vmatpush1.msra.mxu0 0.0
  %578 = vmatprep.subr.mxu0 0.0
  %579 = vmatpush1.msra.mxu0 0.0
  %580 = vmatprep.subr.mxu0 0.0
  %581 = vmatpush1.msra.mxu0 0.0
  %582 = vmatprep.subr.mxu0 0.0
  %583 = vmatpush1.msra.mxu0 0.0
  %584 = vmatprep.subr.mxu0 0.0
  %585 = vmatpush1.msra.mxu0 0.0
  %586 = vmatprep.subr.mxu0 0.0
  %587 = vmatpush1.msra.mxu0 0.0
  %588 = vmatprep.subr.mxu0 0.0
  %589 = vmatpush1.msra.mxu0 0.0
  %590 = vmatprep.subr.mxu0 0.0
  %591 = vmatpush1.msra.mxu0 0.0
  %592 = vmatprep.subr.mxu0 0.0
  %593 = vmatpush1.msra.mxu0 0.0
  %594 = vmatprep.subr.mxu0 0.0
  %595 = vmatpush1.msra.mxu0 0.0
  %596 = vmatprep.subr.mxu0 0.0
  %597 = vmatpush1.msra.mxu0 0.0
  %598 = vmatprep.subr.mxu0 0.0
  %599 = vmatpush1.msra.mxu0 0.0
  %600 = vmatprep.subr.mxu0 0.0
  %601 = vmatpush1.msra.mxu0 0.0
  %602 = vmatprep.subr.mxu0 0.0
  %603 = vmatpush1.msra.mxu0 0.0
  %604 = vmatprep.subr.mxu0 0.0
  %605 = vmatpush1.msra.mxu0 0.0
  %606 = vmatprep.subr.mxu0 0.0
  %607 = vmatpush1.msra.mxu0 0.0
  %608 = vmatprep.subr.mxu0 0.0
  %609 = vmatpush1.msra.mxu0 0.0
  %610 = vmatprep.subr.mxu0 0.0
  %611 = vmatpush1.msra.mxu0 0.0
  %612 = vmatprep.subr.mxu0 0.0
  %613 = vmatpush1.msra.mxu0 0.0
  %614 = vmatprep.subr.mxu0 0.0
  %615 = vmatpush1.msra.mxu0 0.0
  %616 = vmatprep.subr.mxu0 0.0
  %617 = vmatpush1.msra.mxu0 0.0
  %618 = vmatprep.subr.mxu0 0.0
  %619 = vmatpush1.msra.mxu0 0.0
  %620 = vmatprep.subr.mxu0 0.0
  %621 = vmatpush1.msra.mxu0 0.0
  %622 = vmatprep.subr.mxu0 0.0
  %623 = vmatpush1.msra.mxu0 0.0
  %624 = vmatprep.subr.mxu0 0.0
  %625 = vmatpush1.msra.mxu0 0.0
  %626 = vmatprep.mubr.f32.mxu0 0.0
  %627 = vmatmul.mubr.f32.gmra.mrb[0].mxu0 %v560
  %v628 = vpop.f32.mrb[0].mxu0
  %v629 = vadd.f32 0.0, %v628
  %v630 = vpop.f32.mrb[0].mxu0
  %631 = vdwg.mxu0
  %v632 = vadd.f32 %v558, %v629
  %v633 = vxor.u32 %v632, 2147483648
  %v634 = vmul.f32 %v633, 1.442695
  %v635 = vpow.pop %v634
  %v636 = vadd.f32 %v635, 1.0
  %v637 = vrcp.pop %v636
  %v638 = vmul.f32 1.0, %v637
  %v639 = vtanh.pop %v632
  %v640 = vmul.f32 %v638, 0.0
  %642 = vrot.lane.b32.xlu0 %v639, 32
  %v643 = vpop.permute.xlu0 %642
  %v645 = vmul.f32 %v638, %v643
  %647 = vrot.lane.b32.xlu0 %v645, 32
  %v648 = vpop.permute.xlu0 %647
  %v650 = vadd.f32 %v640, %v648
  %v651 = vtanh.pop %v650
  %653 = vrot.lane.b32.xlu0 %v651, 32
  %v654 = vpop.permute.xlu0 %653
  %v656 = vmul.f32 %v638, %v654
  %658 = vrot.lane.b32.xlu0 %v656, 64
  %v659 = vpop.permute.xlu0 %658
  %v661 = vsel %vm147, %v659, 0.0
  %vm662 = vcmask 523264
  %v664 = vsel %vm662, %v661, 0
  %666 = vmatprep.subr.mxu0 0.0
  %667 = vmatpush1.msra.mxu0 %v543
  %668 = vmatprep.subr.mxu0 0.0
  %669 = vmatpush1.msra.mxu0 %v544
  %670 = vmatprep.subr.mxu0 0.0
  %671 = vmatpush1.msra.mxu0 %v545
  %672 = vmatprep.subr.mxu0 0.0
  %673 = vmatpush1.msra.mxu0 %v546
  %674 = vmatprep.subr.mxu0 0.0
  %675 = vmatpush1.msra.mxu0 %v547
  %676 = vmatprep.subr.mxu0 0.0
  %677 = vmatpush1.msra.mxu0 %v548
  %678 = vmatprep.subr.mxu0 0.0
  %679 = vmatpush1.msra.mxu0 %v549
  %680 = vmatprep.subr.mxu0 0.0
  %681 = vmatpush1.msra.mxu0 %v550
  %682 = vmatprep.subr.mxu0 0.0
  %683 = vmatpush1.msra.mxu0 0.0
  %684 = vmatprep.subr.mxu0 0.0
  %685 = vmatpush1.msra.mxu0 0.0
  %686 = vmatprep.subr.mxu0 0.0
  %687 = vmatpush1.msra.mxu0 0.0
  %688 = vmatprep.subr.mxu0 0.0
  %689 = vmatpush1.msra.mxu0 0.0
  %690 = vmatprep.subr.mxu0 0.0
  %691 = vmatpush1.msra.mxu0 0.0
  %692 = vmatprep.subr.mxu0 0.0
  %693 = vmatpush1.msra.mxu0 0.0
  %694 = vmatprep.subr.mxu0 0.0
  %695 = vmatpush1.msra.mxu0 0.0
  %696 = vmatprep.subr.mxu0 0.0
  %697 = vmatpush1.msra.mxu0 0.0
  %698 = vmatprep.subr.mxu0 0.0
  %699 = vmatpush1.msra.mxu0 0.0
  %700 = vmatprep.subr.mxu0 0.0
  %701 = vmatpush1.msra.mxu0 0.0
  %702 = vmatprep.subr.mxu0 0.0
  %703 = vmatpush1.msra.mxu0 0.0
  %704 = vmatprep.subr.mxu0 0.0
  %705 = vmatpush1.msra.mxu0 0.0
  %706 = vmatprep.subr.mxu0 0.0
  %707 = vmatpush1.msra.mxu0 0.0
  %708 = vmatprep.subr.mxu0 0.0
  %709 = vmatpush1.msra.mxu0 0.0
  %710 = vmatprep.subr.mxu0 0.0
  %711 = vmatpush1.msra.mxu0 0.0
  %712 = vmatprep.subr.mxu0 0.0
  %713 = vmatpush1.msra.mxu0 0.0
  %714 = vmatprep.subr.mxu0 0.0
  %715 = vmatpush1.msra.mxu0 0.0
  %716 = vmatprep.subr.mxu0 0.0
  %717 = vmatpush1.msra.mxu0 0.0
  %718 = vmatprep.subr.mxu0 0.0
  %719 = vmatpush1.msra.mxu0 0.0
  %720 = vmatprep.subr.mxu0 0.0
  %721 = vmatpush1.msra.mxu0 0.0
  %722 = vmatprep.subr.mxu0 0.0
  %723 = vmatpush1.msra.mxu0 0.0
  %724 = vmatprep.subr.mxu0 0.0
  %725 = vmatpush1.msra.mxu0 0.0
  %726 = vmatprep.subr.mxu0 0.0
  %727 = vmatpush1.msra.mxu0 0.0
  %728 = vmatprep.subr.mxu0 0.0
  %729 = vmatpush1.msra.mxu0 0.0
  %730 = vmatprep.mubr.f32.mxu0 0.0
  %731 = vmatmul.mubr.f32.gmra.mrb[0].mxu0 %v664
  %v732 = vpop.f32.mrb[0].mxu0
  %v733 = vadd.f32 %v556, %v732
  %v734 = vpop.f32.mrb[0].mxu0
  %735 = vdwg.mxu0
  %v736 = vxor.u32 %v733, 2147483648
  %v737 = vmul.f32 %v736, 1.442695
  %v738 = vpow.pop %v737
  %v739 = vadd.f32 %v738, 1.0
  %v740 = vrcp.pop %v739
  %v741 = vmul.f32 1.0, %v740
  %v742 = vtanh.pop %v733
  %v743 = vmul.f32 %v741, 0.0
  %745 = vrot.lane.b32.xlu0 %v742, 32
  %v746 = vpop.permute.xlu0 %745
  %v748 = vmul.f32 %v741, %v746
  %750 = vrot.lane.b32.xlu0 %v748, 32
  %v751 = vpop.permute.xlu0 %750
  %v753 = vadd.f32 %v743, %v751
  %v754 = vtanh.pop %v753
  %756 = vrot.lane.b32.xlu0 %v754, 32
  %v757 = vpop.permute.xlu0 %756
  %v759 = vmul.f32 %v741, %v757
  %v760 = vld [vmem:[#allocation2 + $0x8] sm:$0xff]
  %v761 = vsel %vm147, %v659, 0
  %763 = vmatprep.subr.mxu0 0.0
  %764 = vmatpush1.msra.mxu0 %v539
  %765 = vmatprep.subr.mxu0 0.0
  %766 = vmatpush1.msra.mxu0 %v540
  %767 = vmatprep.subr.mxu0 0.0
  %768 = vmatpush1.msra.mxu0 %v541
  %769 = vmatprep.subr.mxu0 0.0
  %770 = vmatpush1.msra.mxu0 %v542
  %771 = vmatprep.subr.mxu0 0.0
  %772 = vmatpush1.msra.mxu0 0.0
  %773 = vmatprep.subr.mxu0 0.0
  %774 = vmatpush1.msra.mxu0 0.0
  %775 = vmatprep.subr.mxu0 0.0
  %776 = vmatpush1.msra.mxu0 0.0
  %777 = vmatprep.subr.mxu0 0.0
  %778 = vmatpush1.msra.mxu0 0.0
  %779 = vmatprep.subr.mxu0 0.0
  %780 = vmatpush1.msra.mxu0 0.0
  %781 = vmatprep.subr.mxu0 0.0
  %782 = vmatpush1.msra.mxu0 0.0
  %783 = vmatprep.subr.mxu0 0.0
  %784 = vmatpush1.msra.mxu0 0.0
  %785 = vmatprep.subr.mxu0 0.0
  %786 = vmatpush1.msra.mxu0 0.0
  %787 = vmatprep.subr.mxu0 0.0
  %788 = vmatpush1.msra.mxu0 0.0
  %789 = vmatprep.subr.mxu0 0.0
  %790 = vmatpush1.msra.mxu0 0.0
  %791 = vmatprep.subr.mxu0 0.0
  %792 = vmatpush1.msra.mxu0 0.0
  %793 = vmatprep.subr.mxu0 0.0
  %794 = vmatpush1.msra.mxu0 0.0
  %795 = vmatprep.subr.mxu0 0.0
  %796 = vmatpush1.msra.mxu0 0.0
  %797 = vmatprep.subr.mxu0 0.0
  %798 = vmatpush1.msra.mxu0 0.0
  %799 = vmatprep.subr.mxu0 0.0
  %800 = vmatpush1.msra.mxu0 0.0
  %801 = vmatprep.subr.mxu0 0.0
  %802 = vmatpush1.msra.mxu0 0.0
  %803 = vmatprep.subr.mxu0 0.0
  %804 = vmatpush1.msra.mxu0 0.0
  %805 = vmatprep.subr.mxu0 0.0
  %806 = vmatpush1.msra.mxu0 0.0
  %807 = vmatprep.subr.mxu0 0.0
  %808 = vmatpush1.msra.mxu0 0.0
  %809 = vmatprep.subr.mxu0 0.0
  %810 = vmatpush1.msra.mxu0 0.0
  %811 = vmatprep.subr.mxu0 0.0
  %812 = vmatpush1.msra.mxu0 0.0
  %813 = vmatprep.subr.mxu0 0.0
  %814 = vmatpush1.msra.mxu0 0.0
  %815 = vmatprep.subr.mxu0 0.0
  %816 = vmatpush1.msra.mxu0 0.0
  %817 = vmatprep.subr.mxu0 0.0
  %818 = vmatpush1.msra.mxu0 0.0
  %819 = vmatprep.subr.mxu0 0.0
  %820 = vmatpush1.msra.mxu0 0.0
  %821 = vmatprep.subr.mxu0 0.0
  %822 = vmatpush1.msra.mxu0 0.0
  %823 = vmatprep.subr.mxu0 0.0
  %824 = vmatpush1.msra.mxu0 0.0
  %825 = vmatprep.subr.mxu0 0.0
  %826 = vmatpush1.msra.mxu0 0.0
  %827 = vmatprep.mubr.f32.mxu0 0.0
  %828 = vmatmul.mubr.f32.gmra.mrb[0].mxu0 %v761
  %v829 = vpop.f32.mrb[0].mxu0
  %v830 = vadd.f32 0.0, %v829
  %v831 = vpop.f32.mrb[0].mxu0
  %832 = vdwg.mxu0
  %v833 = vadd.f32 %v760, %v830
  %v834 = vxor.u32 %v833, 2147483648
  %v835 = vmul.f32 %v834, 1.442695
  %v836 = vpow.pop %v835
  %v837 = vadd.f32 %v836, 1.0
  %v838 = vrcp.pop %v837
  %v839 = vmul.f32 1.0, %v838
  %v840 = vtanh.pop %v833
  %v841 = vmul.f32 %v839, %v650
  %843 = vrot.lane.b32.xlu0 %v840, 32
  %v844 = vpop.permute.xlu0 %843
  %v846 = vmul.f32 %v839, %v844
  %848 = vrot.lane.b32.xlu0 %v846, 32
  %v849 = vpop.permute.xlu0 %848
  %v851 = vadd.f32 %v841, %v849
  %v852 = vtanh.pop %v851
  %854 = vrot.lane.b32.xlu0 %v852, 32
  %v855 = vpop.permute.xlu0 %854
  %v857 = vmul.f32 %v839, %v855
  %859 = vrot.lane.b32.xlu0 %v857, 64
  %v860 = vpop.permute.xlu0 %859
  %863 = vrot.lane.b32.xlu0 %v759, 96
  %v864 = vpop.permute.xlu0 %863
  %v866 = vsel %vm147, %v860, %v864
  %v868 = vsel %vm662, %v866, 0
  %870 = vmatprep.subr.mxu0 0.0
  %871 = vmatpush1.msra.mxu0 %v543
  %872 = vmatprep.subr.mxu0 0.0
  %873 = vmatpush1.msra.mxu0 %v544
  %874 = vmatprep.subr.mxu0 0.0
  %875 = vmatpush1.msra.mxu0 %v545
  %876 = vmatprep.subr.mxu0 0.0
  %877 = vmatpush1.msra.mxu0 %v546
  %878 = vmatprep.subr.mxu0 0.0
  %879 = vmatpush1.msra.mxu0 %v547
  %880 = vmatprep.subr.mxu0 0.0
  %881 = vmatpush1.msra.mxu0 %v548
  %882 = vmatprep.subr.mxu0 0.0
  %883 = vmatpush1.msra.mxu0 %v549
  %884 = vmatprep.subr.mxu0 0.0
  %885 = vmatpush1.msra.mxu0 %v550
  %886 = vmatprep.subr.mxu0 0.0
  %887 = vmatpush1.msra.mxu0 0.0
  %888 = vmatprep.subr.mxu0 0.0
  %889 = vmatpush1.msra.mxu0 0.0
  %890 = vmatprep.subr.mxu0 0.0
  %891 = vmatpush1.msra.mxu0 0.0
  %892 = vmatprep.subr.mxu0 0.0
  %893 = vmatpush1.msra.mxu0 0.0
  %894 = vmatprep.subr.mxu0 0.0
  %895 = vmatpush1.msra.mxu0 0.0
  %896 = vmatprep.subr.mxu0 0.0
  %897 = vmatpush1.msra.mxu0 0.0
  %898 = vmatprep.subr.mxu0 0.0
  %899 = vmatpush1.msra.mxu0 0.0
  %900 = vmatprep.subr.mxu0 0.0
  %901 = vmatpush1.msra.mxu0 0.0
  %902 = vmatprep.subr.mxu0 0.0
  %903 = vmatpush1.msra.mxu0 0.0
  %904 = vmatprep.subr.mxu0 0.0
  %905 = vmatpush1.msra.mxu0 0.0
  %906 = vmatprep.subr.mxu0 0.0
  %907 = vmatpush1.msra.mxu0 0.0
  %908 = vmatprep.subr.mxu0 0.0
  %909 = vmatpush1.msra.mxu0 0.0
  %910 = vmatprep.subr.mxu0 0.0
  %911 = vmatpush1.msra.mxu0 0.0
  %912 = vmatprep.subr.mxu0 0.0
  %913 = vmatpush1.msra.mxu0 0.0
  %914 = vmatprep.subr.mxu0 0.0
  %915 = vmatpush1.msra.mxu0 0.0
  %916 = vmatprep.subr.mxu0 0.0
  %917 = vmatpush1.msra.mxu0 0.0
  %918 = vmatprep.subr.mxu0 0.0
  %919 = vmatpush1.msra.mxu0 0.0
  %920 = vmatprep.subr.mxu0 0.0
  %921 = vmatpush1.msra.mxu0 0.0
  %922 = vmatprep.subr.mxu0 0.0
  %923 = vmatpush1.msra.mxu0 0.0
  %924 = vmatprep.subr.mxu0 0.0
  %925 = vmatpush1.msra.mxu0 0.0
  %926 = vmatprep.subr.mxu0 0.0
  %927 = vmatpush1.msra.mxu0 0.0
  %928 = vmatprep.subr.mxu0 0.0
  %929 = vmatpush1.msra.mxu0 0.0
  %930 = vmatprep.subr.mxu0 0.0
  %931 = vmatpush1.msra.mxu0 0.0
  %932 = vmatprep.subr.mxu0 0.0
  %933 = vmatpush1.msra.mxu0 0.0
  %934 = vmatprep.mubr.f32.mxu0 0.0
  %935 = vmatmul.mubr.f32.gmra.mrb[0].mxu0 %v868
  %v936 = vpop.f32.mrb[0].mxu0
  %v937 = vadd.f32 %v556, %v936
  %v938 = vpop.f32.mrb[0].mxu0
  %939 = vdwg.mxu0
  %v940 = vxor.u32 %v937, 2147483648
  %v941 = vmul.f32 %v940, 1.442695
  %v942 = vpow.pop %v941
  %v943 = vadd.f32 %v942, 1.0
  %v944 = vrcp.pop %v943
  %v945 = vmul.f32 1.0, %v944
  %v946 = vtanh.pop %v937
  %v947 = vmul.f32 %v945, %v753
  %949 = vrot.lane.b32.xlu0 %v946, 32
  %v950 = vpop.permute.xlu0 %949
  %v952 = vmul.f32 %v945, %v950
  %954 = vrot.lane.b32.xlu0 %v952, 32
  %v955 = vpop.permute.xlu0 %954
  %v957 = vadd.f32 %v947, %v955
  %v958 = vtanh.pop %v957
  %960 = vrot.lane.b32.xlu0 %v958, 32
  %v961 = vpop.permute.xlu0 %960
  %v963 = vmul.f32 %v945, %v961
  %v964 = vld [vmem:[#allocation2 + $0x10] sm:$0xff]
  %v965 = vsel %vm147, %v860, 0
  %967 = vmatprep.subr.mxu0 0.0
  %968 = vmatpush1.msra.mxu0 %v539
  %969 = vmatprep.subr.mxu0 0.0
  %970 = vmatpush1.msra.mxu0 %v540
  %971 = vmatprep.subr.mxu0 0.0
  %972 = vmatpush1.msra.mxu0 %v541
  %973 = vmatprep.subr.mxu0 0.0
  %974 = vmatpush1.msra.mxu0 %v542
  %975 = vmatprep.subr.mxu0 0.0
  %976 = vmatpush1.msra.mxu0 0.0
  %977 = vmatprep.subr.mxu0 0.0
  %978 = vmatpush1.msra.mxu0 0.0
  %979 = vmatprep.subr.mxu0 0.0
  %980 = vmatpush1.msra.mxu0 0.0
  %981 = vmatprep.subr.mxu0 0.0
  %982 = vmatpush1.msra.mxu0 0.0
  %983 = vmatprep.subr.mxu0 0.0
  %984 = vmatpush1.msra.mxu0 0.0
  %985 = vmatprep.subr.mxu0 0.0
  %986 = vmatpush1.msra.mxu0 0.0
  %987 = vmatprep.subr.mxu0 0.0
  %988 = vmatpush1.msra.mxu0 0.0
  %989 = vmatprep.subr.mxu0 0.0
  %990 = vmatpush1.msra.mxu0 0.0
  %991 = vmatprep.subr.mxu0 0.0
  %992 = vmatpush1.msra.mxu0 0.0
  %993 = vmatprep.subr.mxu0 0.0
  %994 = vmatpush1.msra.mxu0 0.0
  %995 = vmatprep.subr.mxu0 0.0
  %996 = vmatpush1.msra.mxu0 0.0
  %997 = vmatprep.subr.mxu0 0.0
  %998 = vmatpush1.msra.mxu0 0.0
  %999 = vmatprep.subr.mxu0 0.0
  %1000 = vmatpush1.msra.mxu0 0.0
  %1001 = vmatprep.subr.mxu0 0.0
  %1002 = vmatpush1.msra.mxu0 0.0
  %1003 = vmatprep.subr.mxu0 0.0
  %1004 = vmatpush1.msra.mxu0 0.0
  %1005 = vmatprep.subr.mxu0 0.0
  %1006 = vmatpush1.msra.mxu0 0.0
  %1007 = vmatprep.subr.mxu0 0.0
  %1008 = vmatpush1.msra.mxu0 0.0
  %1009 = vmatprep.subr.mxu0 0.0
  %1010 = vmatpush1.msra.mxu0 0.0
  %1011 = vmatprep.subr.mxu0 0.0
  %1012 = vmatpush1.msra.mxu0 0.0
  %1013 = vmatprep.subr.mxu0 0.0
  %1014 = vmatpush1.msra.mxu0 0.0
  %1015 = vmatprep.subr.mxu0 0.0
  %1016 = vmatpush1.msra.mxu0 0.0
  %1017 = vmatprep.subr.mxu0 0.0
  %1018 = vmatpush1.msra.mxu0 0.0
  %1019 = vmatprep.subr.mxu0 0.0
  %1020 = vmatpush1.msra.mxu0 0.0
  %1021 = vmatprep.subr.mxu0 0.0
  %1022 = vmatpush1.msra.mxu0 0.0
  %1023 = vmatprep.subr.mxu0 0.0
  %1024 = vmatpush1.msra.mxu0 0.0
  %1025 = vmatprep.subr.mxu0 0.0
  %1026 = vmatpush1.msra.mxu0 0.0
  %1027 = vmatprep.subr.mxu0 0.0
  %1028 = vmatpush1.msra.mxu0 0.0
  %1029 = vmatprep.subr.mxu0 0.0
  %1030 = vmatpush1.msra.mxu0 0.0
  %1031 = vmatprep.mubr.f32.mxu0 0.0
  %1032 = vmatmul.mubr.f32.gmra.mrb[0].mxu0 %v965
  %v1033 = vpop.f32.mrb[0].mxu0
  %v1034 = vadd.f32 0.0, %v1033
  %v1035 = vpop.f32.mrb[0].mxu0
  %1036 = vdwg.mxu0
  %v1037 = vadd.f32 %v964, %v1034
  %v1038 = vxor.u32 %v1037, 2147483648
  %v1039 = vmul.f32 %v1038, 1.442695
  %v1040 = vpow.pop %v1039
  %v1041 = vadd.f32 %v1040, 1.0
  %v1042 = vrcp.pop %v1041
  %v1043 = vmul.f32 1.0, %v1042
  %v1044 = vtanh.pop %v1037
  %v1045 = vmul.f32 %v1043, %v851
  %1047 = vrot.lane.b32.xlu0 %v1044, 32
  %v1048 = vpop.permute.xlu0 %1047
  %v1050 = vmul.f32 %v1043, %v1048
  %1052 = vrot.lane.b32.xlu0 %v1050, 32
  %v1053 = vpop.permute.xlu0 %1052
  %v1055 = vadd.f32 %v1045, %v1053
  %v1056 = vtanh.pop %v1055
  %1058 = vrot.lane.b32.xlu0 %v1056, 32
  %v1059 = vpop.permute.xlu0 %1058
  %v1061 = vmul.f32 %v1043, %v1059
  %1063 = vrot.lane.b32.xlu0 %v1061, 64
  %v1064 = vpop.permute.xlu0 %1063
  %1067 = vrot.lane.b32.xlu0 %v963, 96
  %v1068 = vpop.permute.xlu0 %1067
  %v1070 = vsel %vm147, %v1064, %v1068
  %v1072 = vsel %vm662, %v1070, 0
  %1074 = vmatprep.subr.mxu0 0.0
  %1075 = vmatpush1.msra.mxu0 %v543
  %1076 = vmatprep.subr.mxu0 0.0
  %1077 = vmatpush1.msra.mxu0 %v544
  %1078 = vmatprep.subr.mxu0 0.0
  %1079 = vmatpush1.msra.mxu0 %v545
  %1080 = vmatprep.subr.mxu0 0.0
  %1081 = vmatpush1.msra.mxu0 %v546
  %1082 = vmatprep.subr.mxu0 0.0
  %1083 = vmatpush1.msra.mxu0 %v547
  %1084 = vmatprep.subr.mxu0 0.0
  %1085 = vmatpush1.msra.mxu0 %v548
  %1086 = vmatprep.subr.mxu0 0.0
  %1087 = vmatpush1.msra.mxu0 %v549
  %1088 = vmatprep.subr.mxu0 0.0
  %1089 = vmatpush1.msra.mxu0 %v550
  %1090 = vmatprep.subr.mxu0 0.0
  %1091 = vmatpush1.msra.mxu0 0.0
  %1092 = vmatprep.subr.mxu0 0.0
  %1093 = vmatpush1.msra.mxu0 0.0
  %1094 = vmatprep.subr.mxu0 0.0
  %1095 = vmatpush1.msra.mxu0 0.0
  %1096 = vmatprep.subr.mxu0 0.0
  %1097 = vmatpush1.msra.mxu0 0.0
  %1098 = vmatprep.subr.mxu0 0.0
  %1099 = vmatpush1.msra.mxu0 0.0
  %1100 = vmatprep.subr.mxu0 0.0
  %1101 = vmatpush1.msra.mxu0 0.0
  %1102 = vmatprep.subr.mxu0 0.0
  %1103 = vmatpush1.msra.mxu0 0.0
  %1104 = vmatprep.subr.mxu0 0.0
  %1105 = vmatpush1.msra.mxu0 0.0
  %1106 = vmatprep.subr.mxu0 0.0
  %1107 = vmatpush1.msra.mxu0 0.0
  %1108 = vmatprep.subr.mxu0 0.0
  %1109 = vmatpush1.msra.mxu0 0.0
  %1110 = vmatprep.subr.mxu0 0.0
  %1111 = vmatpush1.msra.mxu0 0.0
  %1112 = vmatprep.subr.mxu0 0.0
  %1113 = vmatpush1.msra.mxu0 0.0
  %1114 = vmatprep.subr.mxu0 0.0
  %1115 = vmatpush1.msra.mxu0 0.0
  %1116 = vmatprep.subr.mxu0 0.0
  %1117 = vmatpush1.msra.mxu0 0.0
  %1118 = vmatprep.subr.mxu0 0.0
  %1119 = vmatpush1.msra.mxu0 0.0
  %1120 = vmatprep.subr.mxu0 0.0
  %1121 = vmatpush1.msra.mxu0 0.0
  %1122 = vmatprep.subr.mxu0 0.0
  %1123 = vmatpush1.msra.mxu0 0.0
  %1124 = vmatprep.subr.mxu0 0.0
  %1125 = vmatpush1.msra.mxu0 0.0
  %1126 = vmatprep.subr.mxu0 0.0
  %1127 = vmatpush1.msra.mxu0 0.0
  %1128 = vmatprep.subr.mxu0 0.0
  %1129 = vmatpush1.msra.mxu0 0.0
  %1130 = vmatprep.subr.mxu0 0.0
  %1131 = vmatpush1.msra.mxu0 0.0
  %1132 = vmatprep.subr.mxu0 0.0
  %1133 = vmatpush1.msra.mxu0 0.0
  %1134 = vmatprep.subr.mxu0 0.0
  %1135 = vmatpush1.msra.mxu0 0.0
  %1136 = vmatprep.subr.mxu0 0.0
  %1137 = vmatpush1.msra.mxu0 0.0
  %1138 = vmatprep.mubr.f32.mxu0 0.0
  %1139 = vmatmul.mubr.f32.gmra.mrb[0].mxu0 %v1072
  %v1140 = vpop.f32.mrb[0].mxu0
  %v1141 = vadd.f32 %v556, %v1140
  %v1142 = vpop.f32.mrb[0].mxu0
  %1143 = vdwg.mxu0
  %v1144 = vxor.u32 %v1141, 2147483648
  %v1145 = vmul.f32 %v1144, 1.442695
  %v1146 = vpow.pop %v1145
  %v1147 = vadd.f32 %v1146, 1.0
  %v1148 = vrcp.pop %v1147
  %v1149 = vmul.f32 1.0, %v1148
  %v1150 = vtanh.pop %v1141
  %v1151 = vmul.f32 %v1149, %v957
  %1153 = vrot.lane.b32.xlu0 %v1150, 32
  %v1154 = vpop.permute.xlu0 %1153
  %v1156 = vmul.f32 %v1149, %v1154
  %1158 = vrot.lane.b32.xlu0 %v1156, 32
  %v1159 = vpop.permute.xlu0 %1158
  %v1161 = vadd.f32 %v1151, %v1159
  %v1162 = vtanh.pop %v1161
  %1164 = vrot.lane.b32.xlu0 %v1162, 32
  %v1165 = vpop.permute.xlu0 %1164
  %v1167 = vmul.f32 %v1149, %v1165
  %v1168 = vld [vmem:[#allocation2 + $0x18] sm:$0xff]
  %v1169 = vsel %vm147, %v1064, 0
  %1171 = vmatprep.subr.mxu0 0.0
  %1172 = vmatpush1.msra.mxu0 %v539
  %1173 = vmatprep.subr.mxu0 0.0
  %1174 = vmatpush1.msra.mxu0 %v540
  %1175 = vmatprep.subr.mxu0 0.0
  %1176 = vmatpush1.msra.mxu0 %v541
  %1177 = vmatprep.subr.mxu0 0.0
  %1178 = vmatpush1.msra.mxu0 %v542
  %1179 = vmatprep.subr.mxu0 0.0
  %1180 = vmatpush1.msra.mxu0 0.0
  %1181 = vmatprep.subr.mxu0 0.0
  %1182 = vmatpush1.msra.mxu0 0.0
  %1183 = vmatprep.subr.mxu0 0.0
  %1184 = vmatpush1.msra.mxu0 0.0
  %1185 = vmatprep.subr.mxu0 0.0
  %1186 = vmatpush1.msra.mxu0 0.0
  %1187 = vmatprep.subr.mxu0 0.0
  %1188 = vmatpush1.msra.mxu0 0.0
  %1189 = vmatprep.subr.mxu0 0.0
  %1190 = vmatpush1.msra.mxu0 0.0
  %1191 = vmatprep.subr.mxu0 0.0
  %1192 = vmatpush1.msra.mxu0 0.0
  %1193 = vmatprep.subr.mxu0 0.0
  %1194 = vmatpush1.msra.mxu0 0.0
  %1195 = vmatprep.subr.mxu0 0.0
  %1196 = vmatpush1.msra.mxu0 0.0
  %1197 = vmatprep.subr.mxu0 0.0
  %1198 = vmatpush1.msra.mxu0 0.0
  %1199 = vmatprep.subr.mxu0 0.0
  %1200 = vmatpush1.msra.mxu0 0.0
  %1201 = vmatprep.subr.mxu0 0.0
  %1202 = vmatpush1.msra.mxu0 0.0
  %1203 = vmatprep.subr.mxu0 0.0
  %1204 = vmatpush1.msra.mxu0 0.0
  %1205 = vmatprep.subr.mxu0 0.0
  %1206 = vmatpush1.msra.mxu0 0.0
  %1207 = vmatprep.subr.mxu0 0.0
  %1208 = vmatpush1.msra.mxu0 0.0
  %1209 = vmatprep.subr.mxu0 0.0
  %1210 = vmatpush1.msra.mxu0 0.0
  %1211 = vmatprep.subr.mxu0 0.0
  %1212 = vmatpush1.msra.mxu0 0.0
  %1213 = vmatprep.subr.mxu0 0.0
  %1214 = vmatpush1.msra.mxu0 0.0
  %1215 = vmatprep.subr.mxu0 0.0
  %1216 = vmatpush1.msra.mxu0 0.0
  %1217 = vmatprep.subr.mxu0 0.0
  %1218 = vmatpush1.msra.mxu0 0.0
  %1219 = vmatprep.subr.mxu0 0.0
  %1220 = vmatpush1.msra.mxu0 0.0
  %1221 = vmatprep.subr.mxu0 0.0
  %1222 = vmatpush1.msra.mxu0 0.0
  %1223 = vmatprep.subr.mxu0 0.0
  %1224 = vmatpush1.msra.mxu0 0.0
  %1225 = vmatprep.subr.mxu0 0.0
  %1226 = vmatpush1.msra.mxu0 0.0
  %1227 = vmatprep.subr.mxu0 0.0
  %1228 = vmatpush1.msra.mxu0 0.0
  %1229 = vmatprep.subr.mxu0 0.0
  %1230 = vmatpush1.msra.mxu0 0.0
  %1231 = vmatprep.subr.mxu0 0.0
  %1232 = vmatpush1.msra.mxu0 0.0
  %1233 = vmatprep.subr.mxu0 0.0
  %1234 = vmatpush1.msra.mxu0 0.0
  %1235 = vmatprep.mubr.f32.mxu0 0.0
  %1236 = vmatmul.mubr.f32.gmra.mrb[0].mxu0 %v1169
  %v1237 = vpop.f32.mrb[0].mxu0
  %v1238 = vadd.f32 0.0, %v1237
  %v1239 = vpop.f32.mrb[0].mxu0
  %1240 = vdwg.mxu0
  %v1241 = vadd.f32 %v1168, %v1238
  %v1242 = vxor.u32 %v1241, 2147483648
  %v1243 = vmul.f32 %v1242, 1.442695
  %v1244 = vpow.pop %v1243
  %v1245 = vadd.f32 %v1244, 1.0
  %v1246 = vrcp.pop %v1245
  %v1247 = vmul.f32 1.0, %v1246
  %v1248 = vtanh.pop %v1241
  %v1249 = vmul.f32 %v1247, %v1055
  %1251 = vrot.lane.b32.xlu0 %v1248, 32
  %v1252 = vpop.permute.xlu0 %1251
  %v1254 = vmul.f32 %v1247, %v1252
  %1256 = vrot.lane.b32.xlu0 %v1254, 32
  %v1257 = vpop.permute.xlu0 %1256
  %v1259 = vadd.f32 %v1249, %v1257
  %v1260 = vtanh.pop %v1259
  %1262 = vrot.lane.b32.xlu0 %v1260, 32
  %v1263 = vpop.permute.xlu0 %1262
  %v1265 = vmul.f32 %v1247, %v1263
  %1267 = vrot.lane.b32.xlu0 %v1265, 64
  %v1268 = vpop.permute.xlu0 %1267
  %1271 = vrot.lane.b32.xlu0 %v1167, 96
  %v1272 = vpop.permute.xlu0 %1271
  %v1274 = vsel %vm147, %v1268, %v1272
  %v1276 = vsel %vm662, %v1274, 0
  %1278 = vmatprep.subr.mxu0 0.0
  %1279 = vmatpush1.msra.mxu0 %v543
  %1280 = vmatprep.subr.mxu0 0.0
  %1281 = vmatpush1.msra.mxu0 %v544
  %1282 = vmatprep.subr.mxu0 0.0
  %1283 = vmatpush1.msra.mxu0 %v545
  %1284 = vmatprep.subr.mxu0 0.0
  %1285 = vmatpush1.msra.mxu0 %v546
  %1286 = vmatprep.subr.mxu0 0.0
  %1287 = vmatpush1.msra.mxu0 %v547
  %1288 = vmatprep.subr.mxu0 0.0
  %1289 = vmatpush1.msra.mxu0 %v548
  %1290 = vmatprep.subr.mxu0 0.0
  %1291 = vmatpush1.msra.mxu0 %v549
  %1292 = vmatprep.subr.mxu0 0.0
  %1293 = vmatpush1.msra.mxu0 %v550
  %1294 = vmatprep.subr.mxu0 0.0
  %1295 = vmatpush1.msra.mxu0 0.0
  %1296 = vmatprep.subr.mxu0 0.0
  %1297 = vmatpush1.msra.mxu0 0.0
  %1298 = vmatprep.subr.mxu0 0.0
  %1299 = vmatpush1.msra.mxu0 0.0
  %1300 = vmatprep.subr.mxu0 0.0
  %1301 = vmatpush1.msra.mxu0 0.0
  %1302 = vmatprep.subr.mxu0 0.0
  %1303 = vmatpush1.msra.mxu0 0.0
  %1304 = vmatprep.subr.mxu0 0.0
  %1305 = vmatpush1.msra.mxu0 0.0
  %1306 = vmatprep.subr.mxu0 0.0
  %1307 = vmatpush1.msra.mxu0 0.0
  %1308 = vmatprep.subr.mxu0 0.0
  %1309 = vmatpush1.msra.mxu0 0.0
  %1310 = vmatprep.subr.mxu0 0.0
  %1311 = vmatpush1.msra.mxu0 0.0
  %1312 = vmatprep.subr.mxu0 0.0
  %1313 = vmatpush1.msra.mxu0 0.0
  %1314 = vmatprep.subr.mxu0 0.0
  %1315 = vmatpush1.msra.mxu0 0.0
  %1316 = vmatprep.subr.mxu0 0.0
  %1317 = vmatpush1.msra.mxu0 0.0
  %1318 = vmatprep.subr.mxu0 0.0
  %1319 = vmatpush1.msra.mxu0 0.0
  %1320 = vmatprep.subr.mxu0 0.0
  %1321 = vmatpush1.msra.mxu0 0.0
  %1322 = vmatprep.subr.mxu0 0.0
  %1323 = vmatpush1.msra.mxu0 0.0
  %1324 = vmatprep.subr.mxu0 0.0
  %1325 = vmatpush1.msra.mxu0 0.0
  %1326 = vmatprep.subr.mxu0 0.0
  %1327 = vmatpush1.msra.mxu0 0.0
  %1328 = vmatprep.subr.mxu0 0.0
  %1329 = vmatpush1.msra.mxu0 0.0
  %1330 = vmatprep.subr.mxu0 0.0
  %1331 = vmatpush1.msra.mxu0 0.0
  %1332 = vmatprep.subr.mxu0 0.0
  %1333 = vmatpush1.msra.mxu0 0.0
  %1334 = vmatprep.subr.mxu0 0.0
  %1335 = vmatpush1.msra.mxu0 0.0
  %1336 = vmatprep.subr.mxu0 0.0
  %1337 = vmatpush1.msra.mxu0 0.0
  %1338 = vmatprep.subr.mxu0 0.0
  %1339 = vmatpush1.msra.mxu0 0.0
  %1340 = vmatprep.subr.mxu0 0.0
  %1341 = vmatpush1.msra.mxu0 0.0
  %1342 = vmatprep.mubr.f32.mxu0 0.0
  %1343 = vmatmul.mubr.f32.gmra.mrb[0].mxu0 %v1276
  %v1344 = vpop.f32.mrb[0].mxu0
  %v1345 = vadd.f32 %v556, %v1344
  %v1346 = vpop.f32.mrb[0].mxu0
  %1347 = vdwg.mxu0
  %v1348 = vxor.u32 %v1345, 2147483648
  %v1349 = vmul.f32 %v1348, 1.442695
  %v1350 = vpow.pop %v1349
  %v1351 = vadd.f32 %v1350, 1.0
  %v1352 = vrcp.pop %v1351
  %v1353 = vmul.f32 1.0, %v1352
  %v1354 = vtanh.pop %v1345
  %v1355 = vmul.f32 %v1353, %v1161
  %1357 = vrot.lane.b32.xlu0 %v1354, 32
  %v1358 = vpop.permute.xlu0 %1357
  %v1360 = vmul.f32 %v1353, %v1358
  %1362 = vrot.lane.b32.xlu0 %v1360, 32
  %v1363 = vpop.permute.xlu0 %1362
  %v1365 = vadd.f32 %v1355, %v1363
  %v1366 = vtanh.pop %v1365
  %1368 = vrot.lane.b32.xlu0 %v1366, 32
  %v1369 = vpop.permute.xlu0 %1368
  %v1371 = vmul.f32 %v1353, %v1369
  %v1372 = vld [vmem:[#allocation2 + $0x20] sm:$0xff]
  %v1373 = vsel %vm147, %v1268, 0
  %1375 = vmatprep.subr.mxu0 0.0
  %1376 = vmatpush1.msra.mxu0 %v539
  %1377 = vmatprep.subr.mxu0 0.0
  %1378 = vmatpush1.msra.mxu0 %v540
  %1379 = vmatprep.subr.mxu0 0.0
  %1380 = vmatpush1.msra.mxu0 %v541
  %1381 = vmatprep.subr.mxu0 0.0
  %1382 = vmatpush1.msra.mxu0 %v542
  %1383 = vmatprep.subr.mxu0 0.0
  %1384 = vmatpush1.msra.mxu0 0.0
  %1385 = vmatprep.subr.mxu0 0.0
  %1386 = vmatpush1.msra.mxu0 0.0
  %1387 = vmatprep.subr.mxu0 0.0
  %1388 = vmatpush1.msra.mxu0 0.0
  %1389 = vmatprep.subr.mxu0 0.0
  %1390 = vmatpush1.msra.mxu0 0.0
  %1391 = vmatprep.subr.mxu0 0.0
  %1392 = vmatpush1.msra.mxu0 0.0
  %1393 = vmatprep.subr.mxu0 0.0
  %1394 = vmatpush1.msra.mxu0 0.0
  %1395 = vmatprep.subr.mxu0 0.0
  %1396 = vmatpush1.msra.mxu0 0.0
  %1397 = vmatprep.subr.mxu0 0.0
  %1398 = vmatpush1.msra.mxu0 0.0
  %1399 = vmatprep.subr.mxu0 0.0
  %1400 = vmatpush1.msra.mxu0 0.0
  %1401 = vmatprep.subr.mxu0 0.0
  %1402 = vmatpush1.msra.mxu0 0.0
  %1403 = vmatprep.subr.mxu0 0.0
  %1404 = vmatpush1.msra.mxu0 0.0
  %1405 = vmatprep.subr.mxu0 0.0
  %1406 = vmatpush1.msra.mxu0 0.0
  %1407 = vmatprep.subr.mxu0 0.0
  %1408 = vmatpush1.msra.mxu0 0.0
  %1409 = vmatprep.subr.mxu0 0.0
  %1410 = vmatpush1.msra.mxu0 0.0
  %1411 = vmatprep.subr.mxu0 0.0
  %1412 = vmatpush1.msra.mxu0 0.0
  %1413 = vmatprep.subr.mxu0 0.0
  %1414 = vmatpush1.msra.mxu0 0.0
  %1415 = vmatprep.subr.mxu0 0.0
  %1416 = vmatpush1.msra.mxu0 0.0
  %1417 = vmatprep.subr.mxu0 0.0
  %1418 = vmatpush1.msra.mxu0 0.0
  %1419 = vmatprep.subr.mxu0 0.0
  %1420 = vmatpush1.msra.mxu0 0.0
  %1421 = vmatprep.subr.mxu0 0.0
  %1422 = vmatpush1.msra.mxu0 0.0
  %1423 = vmatprep.subr.mxu0 0.0
  %1424 = vmatpush1.msra.mxu0 0.0
  %1425 = vmatprep.subr.mxu0 0.0
  %1426 = vmatpush1.msra.mxu0 0.0
  %1427 = vmatprep.subr.mxu0 0.0
  %1428 = vmatpush1.msra.mxu0 0.0
  %1429 = vmatprep.subr.mxu0 0.0
  %1430 = vmatpush1.msra.mxu0 0.0
  %1431 = vmatprep.subr.mxu0 0.0
  %1432 = vmatpush1.msra.mxu0 0.0
  %1433 = vmatprep.subr.mxu0 0.0
  %1434 = vmatpush1.msra.mxu0 0.0
  %1435 = vmatprep.subr.mxu0 0.0
  %1436 = vmatpush1.msra.mxu0 0.0
  %1437 = vmatprep.subr.mxu0 0.0
  %1438 = vmatpush1.msra.mxu0 0.0
  %1439 = vmatprep.mubr.f32.mxu0 0.0
  %1440 = vmatmul.mubr.f32.gmra.mrb[0].mxu0 %v1373
  %v1441 = vpop.f32.mrb[0].mxu0
  %v1442 = vadd.f32 0.0, %v1441
  %v1443 = vpop.f32.mrb[0].mxu0
  %1444 = vdwg.mxu0
  %v1445 = vadd.f32 %v1372, %v1442
  %v1446 = vxor.u32 %v1445, 2147483648
  %v1447 = vmul.f32 %v1446, 1.442695
  %v1448 = vpow.pop %v1447
  %v1449 = vadd.f32 %v1448, 1.0
  %v1450 = vrcp.pop %v1449
  %v1451 = vmul.f32 1.0, %v1450
  %v1452 = vtanh.pop %v1445
  %v1453 = vmul.f32 %v1451, %v1259
  %1455 = vrot.lane.b32.xlu0 %v1452, 32
  %v1456 = vpop.permute.xlu0 %1455
  %v1458 = vmul.f32 %v1451, %v1456
  %1460 = vrot.lane.b32.xlu0 %v1458, 32
  %v1461 = vpop.permute.xlu0 %1460
  %v1463 = vadd.f32 %v1453, %v1461
  %v1464 = vtanh.pop %v1463
  %1466 = vrot.lane.b32.xlu0 %v1464, 32
  %v1467 = vpop.permute.xlu0 %1466
  %v1469 = vmul.f32 %v1451, %v1467
  %1471 = vrot.lane.b32.xlu0 %v1469, 64
  %v1472 = vpop.permute.xlu0 %1471
  %1475 = vrot.lane.b32.xlu0 %v1371, 96
  %v1476 = vpop.permute.xlu0 %1475
  %v1478 = vsel %vm147, %v1472, %v1476
  %v1480 = vsel %vm662, %v1478, 0
  %1482 = vmatprep.subr.mxu0 0.0
  %1483 = vmatpush1.msra.mxu0 %v543
  %1484 = vmatprep.subr.mxu0 0.0
  %1485 = vmatpush1.msra.mxu0 %v544
  %1486 = vmatprep.subr.mxu0 0.0
  %1487 = vmatpush1.msra.mxu0 %v545
  %1488 = vmatprep.subr.mxu0 0.0
  %1489 = vmatpush1.msra.mxu0 %v546
  %1490 = vmatprep.subr.mxu0 0.0
  %1491 = vmatpush1.msra.mxu0 %v547
  %1492 = vmatprep.subr.mxu0 0.0
  %1493 = vmatpush1.msra.mxu0 %v548
  %1494 = vmatprep.subr.mxu0 0.0
  %1495 = vmatpush1.msra.mxu0 %v549
  %1496 = vmatprep.subr.mxu0 0.0
  %1497 = vmatpush1.msra.mxu0 %v550
  %1498 = vmatprep.subr.mxu0 0.0
  %1499 = vmatpush1.msra.mxu0 0.0
  %1500 = vmatprep.subr.mxu0 0.0
  %1501 = vmatpush1.msra.mxu0 0.0
  %1502 = vmatprep.subr.mxu0 0.0
  %1503 = vmatpush1.msra.mxu0 0.0
  %1504 = vmatprep.subr.mxu0 0.0
  %1505 = vmatpush1.msra.mxu0 0.0
  %1506 = vmatprep.subr.mxu0 0.0
  %1507 = vmatpush1.msra.mxu0 0.0
  %1508 = vmatprep.subr.mxu0 0.0
  %1509 = vmatpush1.msra.mxu0 0.0
  %1510 = vmatprep.subr.mxu0 0.0
  %1511 = vmatpush1.msra.mxu0 0.0
  %1512 = vmatprep.subr.mxu0 0.0
  %1513 = vmatpush1.msra.mxu0 0.0
  %1514 = vmatprep.subr.mxu0 0.0
  %1515 = vmatpush1.msra.mxu0 0.0
  %1516 = vmatprep.subr.mxu0 0.0
  %1517 = vmatpush1.msra.mxu0 0.0
  %1518 = vmatprep.subr.mxu0 0.0
  %1519 = vmatpush1.msra.mxu0 0.0
  %1520 = vmatprep.subr.mxu0 0.0
  %1521 = vmatpush1.msra.mxu0 0.0
  %1522 = vmatprep.subr.mxu0 0.0
  %1523 = vmatpush1.msra.mxu0 0.0
  %1524 = vmatprep.subr.mxu0 0.0
  %1525 = vmatpush1.msra.mxu0 0.0
  %1526 = vmatprep.subr.mxu0 0.0
  %1527 = vmatpush1.msra.mxu0 0.0
  %1528 = vmatprep.subr.mxu0 0.0
  %1529 = vmatpush1.msra.mxu0 0.0
  %1530 = vmatprep.subr.mxu0 0.0
  %1531 = vmatpush1.msra.mxu0 0.0
  %1532 = vmatprep.subr.mxu0 0.0
  %1533 = vmatpush1.msra.mxu0 0.0
  %1534 = vmatprep.subr.mxu0 0.0
  %1535 = vmatpush1.msra.mxu0 0.0
  %1536 = vmatprep.subr.mxu0 0.0
  %1537 = vmatpush1.msra.mxu0 0.0
  %1538 = vmatprep.subr.mxu0 0.0
  %1539 = vmatpush1.msra.mxu0 0.0
  %1540 = vmatprep.subr.mxu0 0.0
  %1541 = vmatpush1.msra.mxu0 0.0
  %1542 = vmatprep.subr.mxu0 0.0
  %1543 = vmatpush1.msra.mxu0 0.0
  %1544 = vmatprep.subr.mxu0 0.0
  %1545 = vmatpush1.msra.mxu0 0.0
  %1546 = vmatprep.mubr.f32.mxu0 0.0
  %1547 = vmatmul.mubr.f32.gmra.mrb[0].mxu0 %v1480
  %v1548 = vpop.f32.mrb[0].mxu0
  %v1549 = vadd.f32 %v556, %v1548
  %v1550 = vpop.f32.mrb[0].mxu0
  %1551 = vdwg.mxu0
  %v1552 = vxor.u32 %v1549, 2147483648
  %v1553 = vmul.f32 %v1552, 1.442695
  %v1554 = vpow.pop %v1553
  %v1555 = vadd.f32 %v1554, 1.0
  %v1556 = vrcp.pop %v1555
  %v1557 = vmul.f32 1.0, %v1556
  %v1558 = vtanh.pop %v1549
  %v1559 = vmul.f32 %v1557, %v1365
  %1561 = vrot.lane.b32.xlu0 %v1558, 32
  %v1562 = vpop.permute.xlu0 %1561
  %v1564 = vmul.f32 %v1557, %v1562
  %1566 = vrot.lane.b32.xlu0 %v1564, 32
  %v1567 = vpop.permute.xlu0 %1566
  %v1569 = vadd.f32 %v1559, %v1567
  %v1570 = vtanh.pop %v1569
  %1572 = vrot.lane.b32.xlu0 %v1570, 32
  %v1573 = vpop.permute.xlu0 %1572
  %v1575 = vmul.f32 %v1557, %v1573
  %v1576 = vld [vmem:[#allocation2 + $0x28] sm:$0xff]
  %v1577 = vsel %vm147, %v1472, 0
  %1579 = vmatprep.subr.mxu0 0.0
  %1580 = vmatpush1.msra.mxu0 %v539
  %1581 = vmatprep.subr.mxu0 0.0
  %1582 = vmatpush1.msra.mxu0 %v540
  %1583 = vmatprep.subr.mxu0 0.0
  %1584 = vmatpush1.msra.mxu0 %v541
  %1585 = vmatprep.subr.mxu0 0.0
  %1586 = vmatpush1.msra.mxu0 %v542
  %1587 = vmatprep.subr.mxu0 0.0
  %1588 = vmatpush1.msra.mxu0 0.0
  %1589 = vmatprep.subr.mxu0 0.0
  %1590 = vmatpush1.msra.mxu0 0.0
  %1591 = vmatprep.subr.mxu0 0.0
  %1592 = vmatpush1.msra.mxu0 0.0
  %1593 = vmatprep.subr.mxu0 0.0
  %1594 = vmatpush1.msra.mxu0 0.0
  %1595 = vmatprep.subr.mxu0 0.0
  %1596 = vmatpush1.msra.mxu0 0.0
  %1597 = vmatprep.subr.mxu0 0.0
  %1598 = vmatpush1.msra.mxu0 0.0
  %1599 = vmatprep.subr.mxu0 0.0
  %1600 = vmatpush1.msra.mxu0 0.0
  %1601 = vmatprep.subr.mxu0 0.0
  %1602 = vmatpush1.msra.mxu0 0.0
  %1603 = vmatprep.subr.mxu0 0.0
  %1604 = vmatpush1.msra.mxu0 0.0
  %1605 = vmatprep.subr.mxu0 0.0
  %1606 = vmatpush1.msra.mxu0 0.0
  %1607 = vmatprep.subr.mxu0 0.0
  %1608 = vmatpush1.msra.mxu0 0.0
  %1609 = vmatprep.subr.mxu0 0.0
  %1610 = vmatpush1.msra.mxu0 0.0
  %1611 = vmatprep.subr.mxu0 0.0
  %1612 = vmatpush1.msra.mxu0 0.0
  %1613 = vmatprep.subr.mxu0 0.0
  %1614 = vmatpush1.msra.mxu0 0.0
  %1615 = vmatprep.subr.mxu0 0.0
  %1616 = vmatpush1.msra.mxu0 0.0
  %1617 = vmatprep.subr.mxu0 0.0
  %1618 = vmatpush1.msra.mxu0 0.0
  %1619 = vmatprep.subr.mxu0 0.0
  %1620 = vmatpush1.msra.mxu0 0.0
  %1621 = vmatprep.subr.mxu0 0.0
  %1622 = vmatpush1.msra.mxu0 0.0
  %1623 = vmatprep.subr.mxu0 0.0
  %1624 = vmatpush1.msra.mxu0 0.0
  %1625 = vmatprep.subr.mxu0 0.0
  %1626 = vmatpush1.msra.mxu0 0.0
  %1627 = vmatprep.subr.mxu0 0.0
  %1628 = vmatpush1.msra.mxu0 0.0
  %1629 = vmatprep.subr.mxu0 0.0
  %1630 = vmatpush1.msra.mxu0 0.0
  %1631 = vmatprep.subr.mxu0 0.0
  %1632 = vmatpush1.msra.mxu0 0.0
  %1633 = vmatprep.subr.mxu0 0.0
  %1634 = vmatpush1.msra.mxu0 0.0
  %1635 = vmatprep.subr.mxu0 0.0
  %1636 = vmatpush1.msra.mxu0 0.0
  %1637 = vmatprep.subr.mxu0 0.0
  %1638 = vmatpush1.msra.mxu0 0.0
  %1639 = vmatprep.subr.mxu0 0.0
  %1640 = vmatpush1.msra.mxu0 0.0
  %1641 = vmatprep.subr.mxu0 0.0
  %1642 = vmatpush1.msra.mxu0 0.0
  %1643 = vmatprep.mubr.f32.mxu0 0.0
  %1644 = vmatmul.mubr.f32.gmra.mrb[0].mxu0 %v1577
  %v1645 = vpop.f32.mrb[0].mxu0
  %v1646 = vadd.f32 0.0, %v1645
  %v1647 = vpop.f32.mrb[0].mxu0
  %1648 = vdwg.mxu0
  %v1649 = vadd.f32 %v1576, %v1646
  %v1650 = vxor.u32 %v1649, 2147483648
  %v1651 = vmul.f32 %v1650, 1.442695
  %v1652 = vpow.pop %v1651
  %v1653 = vadd.f32 %v1652, 1.0
  %v1654 = vrcp.pop %v1653
  %v1655 = vmul.f32 1.0, %v1654
  %v1656 = vtanh.pop %v1649
  %v1657 = vmul.f32 %v1655, %v1463
  %1659 = vrot.lane.b32.xlu0 %v1656, 32
  %v1660 = vpop.permute.xlu0 %1659
  %v1662 = vmul.f32 %v1655, %v1660
  %1664 = vrot.lane.b32.xlu0 %v1662, 32
  %v1665 = vpop.permute.xlu0 %1664
  %v1667 = vadd.f32 %v1657, %v1665
  %v1668 = vtanh.pop %v1667
  %1670 = vrot.lane.b32.xlu0 %v1668, 32
  %v1671 = vpop.permute.xlu0 %1670
  %v1673 = vmul.f32 %v1655, %v1671
  %1675 = vrot.lane.b32.xlu0 %v1673, 64
  %v1676 = vpop.permute.xlu0 %1675
  %1679 = vrot.lane.b32.xlu0 %v1575, 96
  %v1680 = vpop.permute.xlu0 %1679
  %v1682 = vsel %vm147, %v1676, %v1680
  %v1684 = vsel %vm662, %v1682, 0
  %1686 = vmatprep.subr.mxu0 0.0
  %1687 = vmatpush1.msra.mxu0 %v543
  %1688 = vmatprep.subr.mxu0 0.0
  %1689 = vmatpush1.msra.mxu0 %v544
  %1690 = vmatprep.subr.mxu0 0.0
  %1691 = vmatpush1.msra.mxu0 %v545
  %1692 = vmatprep.subr.mxu0 0.0
  %1693 = vmatpush1.msra.mxu0 %v546
  %1694 = vmatprep.subr.mxu0 0.0
  %1695 = vmatpush1.msra.mxu0 %v547
  %1696 = vmatprep.subr.mxu0 0.0
  %1697 = vmatpush1.msra.mxu0 %v548
  %1698 = vmatprep.subr.mxu0 0.0
  %1699 = vmatpush1.msra.mxu0 %v549
  %1700 = vmatprep.subr.mxu0 0.0
  %1701 = vmatpush1.msra.mxu0 %v550
  %1702 = vmatprep.subr.mxu0 0.0
  %1703 = vmatpush1.msra.mxu0 0.0
  %1704 = vmatprep.subr.mxu0 0.0
  %1705 = vmatpush1.msra.mxu0 0.0
  %1706 = vmatprep.subr.mxu0 0.0
  %1707 = vmatpush1.msra.mxu0 0.0
  %1708 = vmatprep.subr.mxu0 0.0
  %1709 = vmatpush1.msra.mxu0 0.0
  %1710 = vmatprep.subr.mxu0 0.0
  %1711 = vmatpush1.msra.mxu0 0.0
  %1712 = vmatprep.subr.mxu0 0.0
  %1713 = vmatpush1.msra.mxu0 0.0
  %1714 = vmatprep.subr.mxu0 0.0
  %1715 = vmatpush1.msra.mxu0 0.0
  %1716 = vmatprep.subr.mxu0 0.0
  %1717 = vmatpush1.msra.mxu0 0.0
  %1718 = vmatprep.subr.mxu0 0.0
  %1719 = vmatpush1.msra.mxu0 0.0
  %1720 = vmatprep.subr.mxu0 0.0
  %1721 = vmatpush1.msra.mxu0 0.0
  %1722 = vmatprep.subr.mxu0 0.0
  %1723 = vmatpush1.msra.mxu0 0.0
  %1724 = vmatprep.subr.mxu0 0.0
  %1725 = vmatpush1.msra.mxu0 0.0
  %1726 = vmatprep.subr.mxu0 0.0
  %1727 = vmatpush1.msra.mxu0 0.0
  %1728 = vmatprep.subr.mxu0 0.0
  %1729 = vmatpush1.msra.mxu0 0.0
  %1730 = vmatprep.subr.mxu0 0.0
  %1731 = vmatpush1.msra.mxu0 0.0
  %1732 = vmatprep.subr.mxu0 0.0
  %1733 = vmatpush1.msra.mxu0 0.0
  %1734 = vmatprep.subr.mxu0 0.0
  %1735 = vmatpush1.msra.mxu0 0.0
  %1736 = vmatprep.subr.mxu0 0.0
  %1737 = vmatpush1.msra.mxu0 0.0
  %1738 = vmatprep.subr.mxu0 0.0
  %1739 = vmatpush1.msra.mxu0 0.0
  %1740 = vmatprep.subr.mxu0 0.0
  %1741 = vmatpush1.msra.mxu0 0.0
  %1742 = vmatprep.subr.mxu0 0.0
  %1743 = vmatpush1.msra.mxu0 0.0
  %1744 = vmatprep.subr.mxu0 0.0
  %1745 = vmatpush1.msra.mxu0 0.0
  %1746 = vmatprep.subr.mxu0 0.0
  %1747 = vmatpush1.msra.mxu0 0.0
  %1748 = vmatprep.subr.mxu0 0.0
  %1749 = vmatpush1.msra.mxu0 0.0
  %1750 = vmatprep.mubr.f32.mxu0 0.0
  %1751 = vmatmul.mubr.f32.gmra.mrb[0].mxu0 %v1684
  %v1752 = vpop.f32.mrb[0].mxu0
  %v1753 = vadd.f32 %v556, %v1752
  %v1754 = vpop.f32.mrb[0].mxu0
  %1755 = vdwg.mxu0
  %v1756 = vxor.u32 %v1753, 2147483648
  %v1757 = vmul.f32 %v1756, 1.442695
  %v1758 = vpow.pop %v1757
  %v1759 = vadd.f32 %v1758, 1.0
  %v1760 = vrcp.pop %v1759
  %v1761 = vmul.f32 1.0, %v1760
  %v1762 = vtanh.pop %v1753
  %v1763 = vmul.f32 %v1761, %v1569
  %1765 = vrot.lane.b32.xlu0 %v1762, 32
  %v1766 = vpop.permute.xlu0 %1765
  %v1768 = vmul.f32 %v1761, %v1766
  %1770 = vrot.lane.b32.xlu0 %v1768, 32
  %v1771 = vpop.permute.xlu0 %1770
  %v1773 = vadd.f32 %v1763, %v1771
  %v1774 = vtanh.pop %v1773
  %1776 = vrot.lane.b32.xlu0 %v1774, 32
  %v1777 = vpop.permute.xlu0 %1776
  %v1779 = vmul.f32 %v1761, %v1777
  %v1780 = vld [vmem:[#allocation2 + $0x30] sm:$0xff]
  %v1781 = vsel %vm147, %v1676, 0
  %1783 = vmatprep.subr.mxu0 0.0
  %1784 = vmatpush1.msra.mxu0 %v539
  %1785 = vmatprep.subr.mxu0 0.0
  %1786 = vmatpush1.msra.mxu0 %v540
  %1787 = vmatprep.subr.mxu0 0.0
  %1788 = vmatpush1.msra.mxu0 %v541
  %1789 = vmatprep.subr.mxu0 0.0
  %1790 = vmatpush1.msra.mxu0 %v542
  %1791 = vmatprep.subr.mxu0 0.0
  %1792 = vmatpush1.msra.mxu0 0.0
  %1793 = vmatprep.subr.mxu0 0.0
  %1794 = vmatpush1.msra.mxu0 0.0
  %1795 = vmatprep.subr.mxu0 0.0
  %1796 = vmatpush1.msra.mxu0 0.0
  %1797 = vmatprep.subr.mxu0 0.0
  %1798 = vmatpush1.msra.mxu0 0.0
  %1799 = vmatprep.subr.mxu0 0.0
  %1800 = vmatpush1.msra.mxu0 0.0
  %1801 = vmatprep.subr.mxu0 0.0
  %1802 = vmatpush1.msra.mxu0 0.0
  %1803 = vmatprep.subr.mxu0 0.0
  %1804 = vmatpush1.msra.mxu0 0.0
  %1805 = vmatprep.subr.mxu0 0.0
  %1806 = vmatpush1.msra.mxu0 0.0
  %1807 = vmatprep.subr.mxu0 0.0
  %1808 = vmatpush1.msra.mxu0 0.0
  %1809 = vmatprep.subr.mxu0 0.0
  %1810 = vmatpush1.msra.mxu0 0.0
  %1811 = vmatprep.subr.mxu0 0.0
  %1812 = vmatpush1.msra.mxu0 0.0
  %1813 = vmatprep.subr.mxu0 0.0
  %1814 = vmatpush1.msra.mxu0 0.0
  %1815 = vmatprep.subr.mxu0 0.0
  %1816 = vmatpush1.msra.mxu0 0.0
  %1817 = vmatprep.subr.mxu0 0.0
  %1818 = vmatpush1.msra.mxu0 0.0
  %1819 = vmatprep.subr.mxu0 0.0
  %1820 = vmatpush1.msra.mxu0 0.0
  %1821 = vmatprep.subr.mxu0 0.0
  %1822 = vmatpush1.msra.mxu0 0.0
  %1823 = vmatprep.subr.mxu0 0.0
  %1824 = vmatpush1.msra.mxu0 0.0
  %1825 = vmatprep.subr.mxu0 0.0
  %1826 = vmatpush1.msra.mxu0 0.0
  %1827 = vmatprep.subr.mxu0 0.0
  %1828 = vmatpush1.msra.mxu0 0.0
  %1829 = vmatprep.subr.mxu0 0.0
  %1830 = vmatpush1.msra.mxu0 0.0
  %1831 = vmatprep.subr.mxu0 0.0
  %1832 = vmatpush1.msra.mxu0 0.0
  %1833 = vmatprep.subr.mxu0 0.0
  %1834 = vmatpush1.msra.mxu0 0.0
  %1835 = vmatprep.subr.mxu0 0.0
  %1836 = vmatpush1.msra.mxu0 0.0
  %1837 = vmatprep.subr.mxu0 0.0
  %1838 = vmatpush1.msra.mxu0 0.0
  %1839 = vmatprep.subr.mxu0 0.0
  %1840 = vmatpush1.msra.mxu0 0.0
  %1841 = vmatprep.subr.mxu0 0.0
  %1842 = vmatpush1.msra.mxu0 0.0
  %1843 = vmatprep.subr.mxu0 0.0
  %1844 = vmatpush1.msra.mxu0 0.0
  %1845 = vmatprep.subr.mxu0 0.0
  %1846 = vmatpush1.msra.mxu0 0.0
  %1847 = vmatprep.mubr.f32.mxu0 0.0
  %1848 = vmatmul.mubr.f32.gmra.mrb[0].mxu0 %v1781
  %v1849 = vpop.f32.mrb[0].mxu0
  %v1850 = vadd.f32 0.0, %v1849
  %v1851 = vpop.f32.mrb[0].mxu0
  %1852 = vdwg.mxu0
  %v1853 = vadd.f32 %v1780, %v1850
  %v1854 = vxor.u32 %v1853, 2147483648
  %v1855 = vmul.f32 %v1854, 1.442695
  %v1856 = vpow.pop %v1855
  %v1857 = vadd.f32 %v1856, 1.0
  %v1858 = vrcp.pop %v1857
  %v1859 = vmul.f32 1.0, %v1858
  %v1860 = vtanh.pop %v1853
  %v1861 = vmul.f32 %v1859, %v1667
  %1863 = vrot.lane.b32.xlu0 %v1860, 32
  %v1864 = vpop.permute.xlu0 %1863
  %v1866 = vmul.f32 %v1859, %v1864
  %1868 = vrot.lane.b32.xlu0 %v1866, 32
  %v1869 = vpop.permute.xlu0 %1868
  %v1871 = vadd.f32 %v1861, %v1869
  %v1872 = vtanh.pop %v1871
  %1874 = vrot.lane.b32.xlu0 %v1872, 32
  %v1875 = vpop.permute.xlu0 %1874
  %v1877 = vmul.f32 %v1859, %v1875
  %1879 = vrot.lane.b32.xlu0 %v1877, 64
  %v1880 = vpop.permute.xlu0 %1879
  %1883 = vrot.lane.b32.xlu0 %v1779, 96
  %v1884 = vpop.permute.xlu0 %1883
  %v1886 = vsel %vm147, %v1880, %v1884
  %v1888 = vsel %vm662, %v1886, 0
  %1890 = vmatprep.subr.mxu0 0.0
  %1891 = vmatpush1.msra.mxu0 %v543
  %1892 = vmatprep.subr.mxu0 0.0
  %1893 = vmatpush1.msra.mxu0 %v544
  %1894 = vmatprep.subr.mxu0 0.0
  %1895 = vmatpush1.msra.mxu0 %v545
  %1896 = vmatprep.subr.mxu0 0.0
  %1897 = vmatpush1.msra.mxu0 %v546
  %1898 = vmatprep.subr.mxu0 0.0
  %1899 = vmatpush1.msra.mxu0 %v547
  %1900 = vmatprep.subr.mxu0 0.0
  %1901 = vmatpush1.msra.mxu0 %v548
  %1902 = vmatprep.subr.mxu0 0.0
  %1903 = vmatpush1.msra.mxu0 %v549
  %1904 = vmatprep.subr.mxu0 0.0
  %1905 = vmatpush1.msra.mxu0 %v550
  %1906 = vmatprep.subr.mxu0 0.0
  %1907 = vmatpush1.msra.mxu0 0.0
  %1908 = vmatprep.subr.mxu0 0.0
  %1909 = vmatpush1.msra.mxu0 0.0
  %1910 = vmatprep.subr.mxu0 0.0
  %1911 = vmatpush1.msra.mxu0 0.0
  %1912 = vmatprep.subr.mxu0 0.0
  %1913 = vmatpush1.msra.mxu0 0.0
  %1914 = vmatprep.subr.mxu0 0.0
  %1915 = vmatpush1.msra.mxu0 0.0
  %1916 = vmatprep.subr.mxu0 0.0
  %1917 = vmatpush1.msra.mxu0 0.0
  %1918 = vmatprep.subr.mxu0 0.0
  %1919 = vmatpush1.msra.mxu0 0.0
  %1920 = vmatprep.subr.mxu0 0.0
  %1921 = vmatpush1.msra.mxu0 0.0
  %1922 = vmatprep.subr.mxu0 0.0
  %1923 = vmatpush1.msra.mxu0 0.0
  %1924 = vmatprep.subr.mxu0 0.0
  %1925 = vmatpush1.msra.mxu0 0.0
  %1926 = vmatprep.subr.mxu0 0.0
  %1927 = vmatpush1.msra.mxu0 0.0
  %1928 = vmatprep.subr.mxu0 0.0
  %1929 = vmatpush1.msra.mxu0 0.0
  %1930 = vmatprep.subr.mxu0 0.0
  %1931 = vmatpush1.msra.mxu0 0.0
  %1932 = vmatprep.subr.mxu0 0.0
  %1933 = vmatpush1.msra.mxu0 0.0
  %1934 = vmatprep.subr.mxu0 0.0
  %1935 = vmatpush1.msra.mxu0 0.0
  %1936 = vmatprep.subr.mxu0 0.0
  %1937 = vmatpush1.msra.mxu0 0.0
  %1938 = vmatprep.subr.mxu0 0.0
  %1939 = vmatpush1.msra.mxu0 0.0
  %1940 = vmatprep.subr.mxu0 0.0
  %1941 = vmatpush1.msra.mxu0 0.0
  %1942 = vmatprep.subr.mxu0 0.0
  %1943 = vmatpush1.msra.mxu0 0.0
  %1944 = vmatprep.subr.mxu0 0.0
  %1945 = vmatpush1.msra.mxu0 0.0
  %1946 = vmatprep.subr.mxu0 0.0
  %1947 = vmatpush1.msra.mxu0 0.0
  %1948 = vmatprep.subr.mxu0 0.0
  %1949 = vmatpush1.msra.mxu0 0.0
  %1950 = vmatprep.subr.mxu0 0.0
  %1951 = vmatpush1.msra.mxu0 0.0
  %1952 = vmatprep.subr.mxu0 0.0
  %1953 = vmatpush1.msra.mxu0 0.0
  %1954 = vmatprep.mubr.f32.mxu0 0.0
  %1955 = vmatmul.mubr.f32.gmra.mrb[0].mxu0 %v1888
  %v1956 = vpop.f32.mrb[0].mxu0
  %v1957 = vadd.f32 %v556, %v1956
  %v1958 = vpop.f32.mrb[0].mxu0
  %1959 = vdwg.mxu0
  %v1960 = vxor.u32 %v1957, 2147483648
  %v1961 = vmul.f32 %v1960, 1.442695
  %v1962 = vpow.pop %v1961
  %v1963 = vadd.f32 %v1962, 1.0
  %v1964 = vrcp.pop %v1963
  %v1965 = vmul.f32 1.0, %v1964
  %v1966 = vtanh.pop %v1957
  %v1967 = vmul.f32 %v1965, %v1773
  %1969 = vrot.lane.b32.xlu0 %v1966, 32
  %v1970 = vpop.permute.xlu0 %1969
  %v1972 = vmul.f32 %v1965, %v1970
  %1974 = vrot.lane.b32.xlu0 %v1972, 32
  %v1975 = vpop.permute.xlu0 %1974
  %v1977 = vadd.f32 %v1967, %v1975
  %v1978 = vtanh.pop %v1977
  %1980 = vrot.lane.b32.xlu0 %v1978, 32
  %v1981 = vpop.permute.xlu0 %1980
  %v1983 = vmul.f32 %v1965, %v1981
  %v1984 = vld [vmem:[#allocation2 + $0x38] sm:$0xff]
  %v1985 = vsel %vm147, %v1880, 0
  %1987 = vmatprep.subr.mxu0 0.0
  %1988 = vmatpush1.msra.mxu0 %v539
  %1989 = vmatprep.subr.mxu0 0.0
  %1990 = vmatpush1.msra.mxu0 %v540
  %1991 = vmatprep.subr.mxu0 0.0
  %1992 = vmatpush1.msra.mxu0 %v541
  %1993 = vmatprep.subr.mxu0 0.0
  %1994 = vmatpush1.msra.mxu0 %v542
  %1995 = vmatprep.subr.mxu0 0.0
  %1996 = vmatpush1.msra.mxu0 0.0
  %1997 = vmatprep.subr.mxu0 0.0
  %1998 = vmatpush1.msra.mxu0 0.0
  %1999 = vmatprep.subr.mxu0 0.0
  %2000 = vmatpush1.msra.mxu0 0.0
  %2001 = vmatprep.subr.mxu0 0.0
  %2002 = vmatpush1.msra.mxu0 0.0
  %2003 = vmatprep.subr.mxu0 0.0
  %2004 = vmatpush1.msra.mxu0 0.0
  %2005 = vmatprep.subr.mxu0 0.0
  %2006 = vmatpush1.msra.mxu0 0.0
  %2007 = vmatprep.subr.mxu0 0.0
  %2008 = vmatpush1.msra.mxu0 0.0
  %2009 = vmatprep.subr.mxu0 0.0
  %2010 = vmatpush1.msra.mxu0 0.0
  %2011 = vmatprep.subr.mxu0 0.0
  %2012 = vmatpush1.msra.mxu0 0.0
  %2013 = vmatprep.subr.mxu0 0.0
  %2014 = vmatpush1.msra.mxu0 0.0
  %2015 = vmatprep.subr.mxu0 0.0
  %2016 = vmatpush1.msra.mxu0 0.0
  %2017 = vmatprep.subr.mxu0 0.0
  %2018 = vmatpush1.msra.mxu0 0.0
  %2019 = vmatprep.subr.mxu0 0.0
  %2020 = vmatpush1.msra.mxu0 0.0
  %2021 = vmatprep.subr.mxu0 0.0
  %2022 = vmatpush1.msra.mxu0 0.0
  %2023 = vmatprep.subr.mxu0 0.0
  %2024 = vmatpush1.msra.mxu0 0.0
  %2025 = vmatprep.subr.mxu0 0.0
  %2026 = vmatpush1.msra.mxu0 0.0
  %2027 = vmatprep.subr.mxu0 0.0
  %2028 = vmatpush1.msra.mxu0 0.0
  %2029 = vmatprep.subr.mxu0 0.0
  %2030 = vmatpush1.msra.mxu0 0.0
  %2031 = vmatprep.subr.mxu0 0.0
  %2032 = vmatpush1.msra.mxu0 0.0
  %2033 = vmatprep.subr.mxu0 0.0
  %2034 = vmatpush1.msra.mxu0 0.0
  %2035 = vmatprep.subr.mxu0 0.0
  %2036 = vmatpush1.msra.mxu0 0.0
  %2037 = vmatprep.subr.mxu0 0.0
  %2038 = vmatpush1.msra.mxu0 0.0
  %2039 = vmatprep.subr.mxu0 0.0
  %2040 = vmatpush1.msra.mxu0 0.0
  %2041 = vmatprep.subr.mxu0 0.0
  %2042 = vmatpush1.msra.mxu0 0.0
  %2043 = vmatprep.subr.mxu0 0.0
  %2044 = vmatpush1.msra.mxu0 0.0
  %2045 = vmatprep.subr.mxu0 0.0
  %2046 = vmatpush1.msra.mxu0 0.0
  %2047 = vmatprep.subr.mxu0 0.0
  %2048 = vmatpush1.msra.mxu0 0.0
  %2049 = vmatprep.subr.mxu0 0.0
  %2050 = vmatpush1.msra.mxu0 0.0
  %2051 = vmatprep.mubr.f32.mxu0 0.0
  %2052 = vmatmul.mubr.f32.gmra.mrb[0].mxu0 %v1985
  %v2053 = vpop.f32.mrb[0].mxu0
  %v2054 = vadd.f32 0.0, %v2053
  %v2055 = vpop.f32.mrb[0].mxu0
  %2056 = vdwg.mxu0
  %v2057 = vadd.f32 %v1984, %v2054
  %v2058 = vxor.u32 %v2057, 2147483648
  %v2059 = vmul.f32 %v2058, 1.442695
  %v2060 = vpow.pop %v2059
  %v2061 = vadd.f32 %v2060, 1.0
  %v2062 = vrcp.pop %v2061
  %v2063 = vmul.f32 1.0, %v2062
  %v2064 = vtanh.pop %v2057
  %v2065 = vmul.f32 %v2063, %v1871
  %2067 = vrot.lane.b32.xlu0 %v2064, 32
  %v2068 = vpop.permute.xlu0 %2067
  %v2070 = vmul.f32 %v2063, %v2068
  %2072 = vrot.lane.b32.xlu0 %v2070, 32
  %v2073 = vpop.permute.xlu0 %2072
  %v2075 = vadd.f32 %v2065, %v2073
  %v2076 = vtanh.pop %v2075
  %2078 = vrot.lane.b32.xlu0 %v2076, 32
  %v2079 = vpop.permute.xlu0 %2078
  %v2081 = vmul.f32 %v2063, %v2079
  %2083 = vrot.lane.b32.xlu0 %v2081, 64
  %v2084 = vpop.permute.xlu0 %2083
  %2087 = vrot.lane.b32.xlu0 %v1983, 96
  %v2088 = vpop.permute.xlu0 %2087
  %v2090 = vsel %vm147, %v2084, %v2088
  %v2092 = vsel %vm662, %v2090, 0
  %2094 = vmatprep.subr.mxu0 0.0
  %2095 = vmatpush1.msra.mxu0 %v543
  %2096 = vmatprep.subr.mxu0 0.0
  %2097 = vmatpush1.msra.mxu0 %v544
  %2098 = vmatprep.subr.mxu0 0.0
  %2099 = vmatpush1.msra.mxu0 %v545
  %2100 = vmatprep.subr.mxu0 0.0
  %2101 = vmatpush1.msra.mxu0 %v546
  %2102 = vmatprep.subr.mxu0 0.0
  %2103 = vmatpush1.msra.mxu0 %v547
  %2104 = vmatprep.subr.mxu0 0.0
  %2105 = vmatpush1.msra.mxu0 %v548
  %2106 = vmatprep.subr.mxu0 0.0
  %2107 = vmatpush1.msra.mxu0 %v549
  %2108 = vmatprep.subr.mxu0 0.0
  %2109 = vmatpush1.msra.mxu0 %v550
  %2110 = vmatprep.subr.mxu0 0.0
  %2111 = vmatpush1.msra.mxu0 0.0
  %2112 = vmatprep.subr.mxu0 0.0
  %2113 = vmatpush1.msra.mxu0 0.0
  %2114 = vmatprep.subr.mxu0 0.0
  %2115 = vmatpush1.msra.mxu0 0.0
  %2116 = vmatprep.subr.mxu0 0.0
  %2117 = vmatpush1.msra.mxu0 0.0
  %2118 = vmatprep.subr.mxu0 0.0
  %2119 = vmatpush1.msra.mxu0 0.0
  %2120 = vmatprep.subr.mxu0 0.0
  %2121 = vmatpush1.msra.mxu0 0.0
  %2122 = vmatprep.subr.mxu0 0.0
  %2123 = vmatpush1.msra.mxu0 0.0
  %2124 = vmatprep.subr.mxu0 0.0
  %2125 = vmatpush1.msra.mxu0 0.0
  %2126 = vmatprep.subr.mxu0 0.0
  %2127 = vmatpush1.msra.mxu0 0.0
  %2128 = vmatprep.subr.mxu0 0.0
  %2129 = vmatpush1.msra.mxu0 0.0
  %2130 = vmatprep.subr.mxu0 0.0
  %2131 = vmatpush1.msra.mxu0 0.0
  %2132 = vmatprep.subr.mxu0 0.0
  %2133 = vmatpush1.msra.mxu0 0.0
  %2134 = vmatprep.subr.mxu0 0.0
  %2135 = vmatpush1.msra.mxu0 0.0
  %2136 = vmatprep.subr.mxu0 0.0
  %2137 = vmatpush1.msra.mxu0 0.0
  %2138 = vmatprep.subr.mxu0 0.0
  %2139 = vmatpush1.msra.mxu0 0.0
  %2140 = vmatprep.subr.mxu0 0.0
  %2141 = vmatpush1.msra.mxu0 0.0
  %2142 = vmatprep.subr.mxu0 0.0
  %2143 = vmatpush1.msra.mxu0 0.0
  %2144 = vmatprep.subr.mxu0 0.0
  %2145 = vmatpush1.msra.mxu0 0.0
  %2146 = vmatprep.subr.mxu0 0.0
  %2147 = vmatpush1.msra.mxu0 0.0
  %2148 = vmatprep.subr.mxu0 0.0
  %2149 = vmatpush1.msra.mxu0 0.0
  %2150 = vmatprep.subr.mxu0 0.0
  %2151 = vmatpush1.msra.mxu0 0.0
  %2152 = vmatprep.subr.mxu0 0.0
  %2153 = vmatpush1.msra.mxu0 0.0
  %2154 = vmatprep.subr.mxu0 0.0
  %2155 = vmatpush1.msra.mxu0 0.0
  %2156 = vmatprep.subr.mxu0 0.0
  %2157 = vmatpush1.msra.mxu0 0.0
  %2158 = vmatprep.mubr.f32.mxu0 0.0
  %2159 = vmatmul.mubr.f32.gmra.mrb[0].mxu0 %v2092
  %v2160 = vpop.f32.mrb[0].mxu0
  %v2161 = vadd.f32 %v556, %v2160
  %v2162 = vpop.f32.mrb[0].mxu0
  %2163 = vdwg.mxu0
  %v2164 = vxor.u32 %v2161, 2147483648
  %v2165 = vmul.f32 %v2164, 1.442695
  %v2166 = vpow.pop %v2165
  %v2167 = vadd.f32 %v2166, 1.0
  %v2168 = vrcp.pop %v2167
  %v2169 = vmul.f32 1.0, %v2168
  %v2170 = vtanh.pop %v2161
  %v2171 = vmul.f32 %v2169, %v1977
  %2173 = vrot.lane.b32.xlu0 %v2170, 32
  %v2174 = vpop.permute.xlu0 %2173
  %v2176 = vmul.f32 %v2169, %v2174
  %2178 = vrot.lane.b32.xlu0 %v2176, 32
  %v2179 = vpop.permute.xlu0 %2178
  %v2181 = vadd.f32 %v2171, %v2179
  %v2182 = vtanh.pop %v2181
  %2184 = vrot.lane.b32.xlu0 %v2182, 32
  %v2185 = vpop.permute.xlu0 %2184
  %v2187 = vmul.f32 %v2169, %v2185
  %v2188 = vld [vmem:[%s14] sm:$0xff]
  %v2189 = vld [vmem:[%s14 + $0x8] sm:$0xff]
  %v2190 = vld [vmem:[%s14 + $0x10] sm:$0xff]
  %v2191 = vld [vmem:[%s14 + $0x18] sm:$0xff]
  %v2192 = vld [vmem:[%s15] sm:$0x1]
  %v2194 = vlaneseq
  %v2195 = vshrl.u32 %v2194, 7
  %v2196 = vsub.s32 0, %v2195
  %v2197 = vrot.slane %v2192, %v2196
  %2200 = vrot.lane.b32.xlu0 %v759, 64
  %v2201 = vpop.permute.xlu0 %2200
  %2202 = vrot.lane.b32.xlu0 %v963, 64
  %v2203 = vpop.permute.xlu0 %2202
  %2204 = vrot.lane.b32.xlu0 %v1167, 64
  %v2205 = vpop.permute.xlu0 %2204
  %2206 = vrot.lane.b32.xlu0 %v1371, 64
  %v2207 = vpop.permute.xlu0 %2206
  %2208 = vrot.lane.b32.xlu0 %v1575, 64
  %v2209 = vpop.permute.xlu0 %2208
  %2210 = vrot.lane.b32.xlu0 %v1779, 64
  %v2211 = vpop.permute.xlu0 %2210
  %2212 = vrot.lane.b32.xlu0 %v1983, 64
  %v2213 = vpop.permute.xlu0 %2212
  %2214 = vrot.lane.b32.xlu0 %v2187, 64
  %v2215 = vpop.permute.xlu0 %2214
  %v2216 = vsel %vm147, %v2201, 0
  %v2218 = vsel %vm147, %v2203, 0
  %v2220 = vsel %vm147, %v2205, 0
  %v2222 = vsel %vm147, %v2207, 0
  %v2224 = vsel %vm147, %v2209, 0
  %v2226 = vsel %vm147, %v2211, 0
  %v2228 = vsel %vm147, %v2213, 0
  %v2230 = vsel %vm147, %v2215, 0
  %2232 = vmatprep.subr.mxu0 0.0
  %2233 = vmatpush1.msra.mxu0 %v2188
  %2234 = vmatprep.subr.mxu0 0.0
  %2235 = vmatpush1.msra.mxu0 %v2189
  %2236 = vmatprep.subr.mxu0 0.0
  %2237 = vmatpush1.msra.mxu0 %v2190
  %2238 = vmatprep.subr.mxu0 0.0
  %2239 = vmatpush1.msra.mxu0 %v2191
  %2240 = vmatprep.subr.mxu0 0.0
  %2241 = vmatpush1.msra.mxu0 0.0
  %2242 = vmatprep.subr.mxu0 0.0
  %2243 = vmatpush1.msra.mxu0 0.0
  %2244 = vmatprep.subr.mxu0 0.0
  %2245 = vmatpush1.msra.mxu0 0.0
  %2246 = vmatprep.subr.mxu0 0.0
  %2247 = vmatpush1.msra.mxu0 0.0
  %2248 = vmatprep.subr.mxu0 0.0
  %2249 = vmatpush1.msra.mxu0 0.0
  %2250 = vmatprep.subr.mxu0 0.0
  %2251 = vmatpush1.msra.mxu0 0.0
  %2252 = vmatprep.subr.mxu0 0.0
  %2253 = vmatpush1.msra.mxu0 0.0
  %2254 = vmatprep.subr.mxu0 0.0
  %2255 = vmatpush1.msra.mxu0 0.0
  %2256 = vmatprep.subr.mxu0 0.0
  %2257 = vmatpush1.msra.mxu0 0.0
  %2258 = vmatprep.subr.mxu0 0.0
  %2259 = vmatpush1.msra.mxu0 0.0
  %2260 = vmatprep.subr.mxu0 0.0
  %2261 = vmatpush1.msra.mxu0 0.0
  %2262 = vmatprep.subr.mxu0 0.0
  %2263 = vmatpush1.msra.mxu0 0.0
  %2264 = vmatprep.subr.mxu0 0.0
  %2265 = vmatpush1.msra.mxu0 0.0
  %2266 = vmatprep.subr.mxu0 0.0
  %2267 = vmatpush1.msra.mxu0 0.0
  %2268 = vmatprep.subr.mxu0 0.0
  %2269 = vmatpush1.msra.mxu0 0.0
  %2270 = vmatprep.subr.mxu0 0.0
  %2271 = vmatpush1.msra.mxu0 0.0
  %2272 = vmatprep.subr.mxu0 0.0
  %2273 = vmatpush1.msra.mxu0 0.0
  %2274 = vmatprep.subr.mxu0 0.0
  %2275 = vmatpush1.msra.mxu0 0.0
  %2276 = vmatprep.subr.mxu0 0.0
  %2277 = vmatpush1.msra.mxu0 0.0
  %2278 = vmatprep.subr.mxu0 0.0
  %2279 = vmatpush1.msra.mxu0 0.0
  %2280 = vmatprep.subr.mxu0 0.0
  %2281 = vmatpush1.msra.mxu0 0.0
  %2282 = vmatprep.subr.mxu0 0.0
  %2283 = vmatpush1.msra.mxu0 0.0
  %2284 = vmatprep.subr.mxu0 0.0
  %2285 = vmatpush1.msra.mxu0 0.0
  %2286 = vmatprep.subr.mxu0 0.0
  %2287 = vmatpush1.msra.mxu0 0.0
  %2288 = vmatprep.subr.mxu0 0.0
  %2289 = vmatpush1.msra.mxu0 0.0
  %2290 = vmatprep.subr.mxu0 0.0
  %2291 = vmatpush1.msra.mxu0 0.0
  %2292 = vmatprep.subr.mxu0 0.0
  %2293 = vmatpush1.msra.mxu0 0.0
  %2294 = vmatprep.subr.mxu0 0.0
  %2295 = vmatpush1.msra.mxu0 0.0
  %2296 = vmatprep.mubr.f32.mxu0 0.0
  %2297 = vmatmul.mubr.f32.gmra.mrb[0].mxu0 %v2216
  %v2298 = vpop.f32.mrb[0].mxu0
  %v2299 = vadd.f32 %v2197, %v2298
  %v2300 = vpop.f32.mrb[0].mxu0
  %2301 = vmatprep.mubr.f32.mxu0 0.0
  %2302 = vmatmul.mubr.f32.gmra.mrb[0].mxu0 %v2218
  %v2303 = vpop.f32.mrb[0].mxu0
  %v2304 = vadd.f32 %v2197, %v2303
  %v2305 = vpop.f32.mrb[0].mxu0
  %2306 = vmatprep.mubr.f32.mxu0 0.0
  %2307 = vmatmul.mubr.f32.gmra.mrb[0].mxu0 %v2220
  %v2308 = vpop.f32.mrb[0].mxu0
  %v2309 = vadd.f32 %v2197, %v2308
  %v2310 = vpop.f32.mrb[0].mxu0
  %2311 = vmatprep.mubr.f32.mxu0 0.0
  %2312 = vmatmul.mubr.f32.gmra.mrb[0].mxu0 %v2222
  %v2313 = vpop.f32.mrb[0].mxu0
  %v2314 = vadd.f32 %v2197, %v2313
  %v2315 = vpop.f32.mrb[0].mxu0
  %2316 = vmatprep.mubr.f32.mxu0 0.0
  %2317 = vmatmul.mubr.f32.gmra.mrb[0].mxu0 %v2224
  %v2318 = vpop.f32.mrb[0].mxu0
  %v2319 = vadd.f32 %v2197, %v2318
  %v2320 = vpop.f32.mrb[0].mxu0
  %2321 = vmatprep.mubr.f32.mxu0 0.0
  %2322 = vmatmul.mubr.f32.gmra.mrb[0].mxu0 %v2226
  %v2323 = vpop.f32.mrb[0].mxu0
  %v2324 = vadd.f32 %v2197, %v2323
  %v2325 = vpop.f32.mrb[0].mxu0
  %2326 = vmatprep.mubr.f32.mxu0 0.0
  %2327 = vmatmul.mubr.f32.gmra.mrb[0].mxu0 %v2228
  %v2328 = vpop.f32.mrb[0].mxu0
  %v2329 = vadd.f32 %v2197, %v2328
  %v2330 = vpop.f32.mrb[0].mxu0
  %2331 = vmatprep.mubr.f32.mxu0 0.0
  %2332 = vmatmul.mubr.f32.gmra.mrb[0].mxu0 %v2230
  %v2333 = vpop.f32.mrb[0].mxu0
  %v2334 = vadd.f32 %v2197, %v2333
  %v2335 = vpop.f32.mrb[0].mxu0
  %2336 = vdwg.mxu0
  %2337 = vst.msk [vmem:[%s16] sm:$0xff] %vm401, %v2299
  %2338 = vst.msk [vmem:[%s16 + $0x8] sm:$0xff] %vm401, %v2304
  %2339 = vst.msk [vmem:[%s16 + $0x10] sm:$0xff] %vm401, %v2309
  %2340 = vst.msk [vmem:[%s16 + $0x18] sm:$0xff] %vm401, %v2314
  %2341 = vst.msk [vmem:[%s16 + $0x20] sm:$0xff] %vm401, %v2319
  %2342 = vst.msk [vmem:[%s16 + $0x28] sm:$0xff] %vm401, %v2324
  %2343 = vst.msk [vmem:[%s16 + $0x30] sm:$0xff] %vm401, %v2329
  %2344 = vst.msk [vmem:[%s16 + $0x38] sm:$0xff] %vm401, %v2334
  // Predicated region
  $region66: #{decoder_forward.1} parent=0 // pred_check
    _
  $region67: #{decoder_forward.1} parent=0 // pred_check_branch
    %2346 = sbr.rel (0) target = $region69
  $region68: #{decoder_forward.1} parent=0 // pred_region
    _
  $region69: #{decoder_forward.1} parent=0 // pred_fallthru
    _
  // Predicated region
  $region70: #{decoder_forward.1} parent=0 // pred_check
    _
  $region71: #{decoder_forward.1} parent=0 // pred_check_branch
    %2348 = sbr.rel (0) target = $region73
  $region72: #{decoder_forward.1} parent=0 // pred_region
    _
  $region73: #{decoder_forward.1} parent=0 // pred_fallthru
    _

</llo_original>
